<compile_context>
chip_gen: v5e
topology: v5e:2x2
jax: 0.10.0
libtpu: 0.0.40
codegen_flags: <defaults>
</compile_context>

<pallas_src>
import functools

import jax
import jax.numpy as jnp
from jax import lax
from jax.experimental import pallas as pl
from jax.experimental.pallas import tpu as pltpu


def mccnet_kernel(content_ref, style_ref,
                  wf_ref, bf_ref,
                  wg_ref, bg_ref,
                  wo_ref, bo_ref,
                  wfc_ref, bfc_ref,
                  out_ref,
                  c_s1, c_s2, s_s1, s_s2, g_s1, g_s2, m_sc, beff_sc,
                  *, hw_total, mxu_dtype):
    eps = 1e-5
    inv_hw = 1.0 / hw_total
    inv_hwm1 = 1.0 / (hw_total - 1)
    p = pl.program_id(1)            # phase: 0 stats, 1 style/g, 2 content/out
    t = pl.program_id(2)            # HW tile
    nt = pl.num_programs(2)

    def finish_moments(s1, s2):
        mean = s1 * inv_hw
        # One-pass unbiased variance; clamp >=0 so rsqrt stays finite even if
        # a channel's mean dwarfs its std (cancellation guard).
        var = jnp.maximum((s2 - s1 * mean) * inv_hwm1, 0.0)
        return mean, lax.rsqrt(var + eps)                  # EUP, ~free slot

    # ---- phase 0: per-channel sum / sum-of-squares of content & style ----
    @pl.when(p == 0)
    def _stats():
        @pl.when(t == 0)
        def _init():
            c_s1[...] = jnp.zeros_like(c_s1)
            c_s2[...] = jnp.zeros_like(c_s2)
            s_s1[...] = jnp.zeros_like(s_s1)
            s_s2[...] = jnp.zeros_like(s_s2)
            g_s1[...] = jnp.zeros_like(g_s1)
            g_s2[...] = jnp.zeros_like(g_s2)

        c = content_ref[0]                                  # (C, hw_block)
        s = style_ref[0]
        c_s1[...] += jnp.sum(c, axis=1, keepdims=True)
        c_s2[...] += jnp.sum(c * c, axis=1, keepdims=True)
        s_s1[...] += jnp.sum(s, axis=1, keepdims=True)
        s_s2[...] += jnp.sum(s * s, axis=1, keepdims=True)

    # ---- phase 1: style instance-norm -> g -> FC_S stats; fold out_conv ----
    @pl.when(p == 1)
    def _style():
        s_mean, s_inv = finish_moments(s_s1[...], s_s2[...])
        s_norm = (style_ref[0] - s_mean) * s_inv            # f32
        g = jnp.dot(wg_ref[...], s_norm.astype(mxu_dtype),  # bf16 MXU, f32 acc
                    preferred_element_type=jnp.float32) + bg_ref[...]
        g_s1[...] += jnp.sum(g, axis=1, keepdims=True)
        g_s2[...] += jnp.sum(g * g, axis=1, keepdims=True)

        @pl.when(t == nt - 1)
        def _finalize():
            # FC_S = (sum_hw g^2) / (sum_hw g), then the fc Linear.  The
            # spatial-sum denominator matches the PyTorch reference exactly
            # (fragile near bg ~ 0, but that's the spec).
            fc_s = g_s2[...] / g_s1[...]                    # (C, 1)
            fc_s = jnp.dot(wfc_ref[...], fc_s,
                           preferred_element_type=jnp.float32) + bfc_ref[...]
            # Fold the per-channel modulation into the out_conv weight:
            #   out_conv(fc_s * (Wf @ c_norm + bf)) + bo
            # = (Wo @ diag(fc_s) @ Wf) @ c_norm + Wo @ (fc_s * bf) + bo
            m = jnp.dot(wo_ref[...], fc_s * wf_ref[...],
                        preferred_element_type=jnp.float32)          # (C, C)
            m_sc[...] = m.astype(m_sc.dtype)
            beff_sc[...] = (jnp.dot(wo_ref[...], fc_s * bf_ref[...],
                                    preferred_element_type=jnp.float32)
                            + bo_ref[...])                            # (C, 1)

    # ---- phase 2: content instance-norm -> fused matmul -> residual ----
    @pl.when(p == 2)
    def _content():
        c_mean, c_inv = finish_moments(c_s1[...], c_s2[...])
        c = content_ref[0]
        c_norm = (c - c_mean) * c_inv
        out = jnp.dot(m_sc[...], c_norm.astype(mxu_dtype),  # bf16 MXU, f32 acc
                      preferred_element_type=jnp.float32) + beff_sc[...]
        out_ref[0] = c + out


def _pick_hw_block(C, HW, budget_bytes=16 * 1024 * 1024):
    """Largest HW tile (multiple of 128 dividing HW) whose double-buffered
    content+style+out f32 working set stays under `budget_bytes`, so the
    kernel fits v7x's 64 MiB physical VMEM with headroom (v5e/v6e: 128 MiB).
    At production C=512, HW=4096 this picks 1024."""
    if 6 * C * HW * 4 <= budget_bytes or HW % 128 != 0:
        return HW
    cand = max((budget_bytes // (6 * C * 4)) // 128 * 128, 128)
    while cand > 128 and HW % cand != 0:
        cand -= 128
    return cand if HW % cand == 0 else HW


@functools.partial(jax.jit, static_argnames=("hw_block", "use_bf16"))
def mccnet_forward(content_nchw, style_nchw, params, *,
                   hw_block=None, use_bf16=True):
    """content/style: (B, C, H, W) float32.  Returns (B, C, H, W) float32."""
    B, C, H, W = content_nchw.shape
    HW = H * W
    mxu_dtype = jnp.bfloat16 if use_bf16 else jnp.float32

    # NCHW -> (B, C, HW): channels on sublanes, HW on lanes; pure reshape
    # (no HBM transpose).
    content = content_nchw.reshape(B, C, HW)
    style = style_nchw.reshape(B, C, HW)

    # 1x1 conv weights (out,in,1,1) / Linear weight (out,in) are consumed as
    # (C,C) matrices (y = W @ x); biases become (C,1) columns that broadcast
    # along the lane (HW) axis.
    wf = params["wf"].reshape(C, C)
    wg = params["wg"].reshape(C, C).astype(mxu_dtype)   # MXU operand pre-cast
    wo = params["wo"].reshape(C, C)
    wfc = params["wfc"]
    bf = params["bf"].reshape(C, 1)
    bg = params["bg"].reshape(C, 1)
    bo = params["bo"].reshape(C, 1)
    bfc = params["bfc"].reshape(C, 1)

    if hw_block is None:
        hw_block = _pick_hw_block(C, HW)
    hw_block = min(hw_block, HW)
    assert HW % hw_block == 0, "hw_block must divide H*W"
    assert hw_block == HW or hw_block % 128 == 0, "hw_block must be lane-aligned"
    num_t = HW // hw_block

    # Grid: (batch, phase, hw_tile).  Batch is 'parallel' (B>=2 grid steps keep
    # both v7x TensorCores busy); phase/hw carry scratch -> 'arbitrary'.
    grid = (B, 3, num_t)

    # Phase-aware index maps keep a block resident (no re-DMA) during phases
    # that don't read it; with num_t == 1 each input block is DMA'd exactly
    # once per sample.  Output blocks are only flushed after phase 2 writes
    # them (same block index is revisited during phases 0/1).
    content_spec = pl.BlockSpec(
        (1, C, hw_block), lambda b, p, t: (b, 0, jnp.where(p == 1, 0, t)))
    style_spec = pl.BlockSpec(
        (1, C, hw_block), lambda b, p, t: (b, 0, jnp.where(p == 2, 0, t)))
    out_spec = pl.BlockSpec(
        (1, C, hw_block), lambda b, p, t: (b, 0, jnp.where(p == 2, t, 0)))
    mat_spec = pl.BlockSpec((C, C), lambda b, p, t: (0, 0))
    vec_spec = pl.BlockSpec((C, 1), lambda b, p, t: (0, 0))

    kernel = functools.partial(mccnet_kernel, hw_total=HW, mxu_dtype=mxu_dtype)

    out = pl.pallas_call(
        kernel,
        out_shape=jax.ShapeDtypeStruct((B, C, HW), jnp.float32),
        grid_spec=pltpu.PrefetchScalarGridSpec(
            num_scalar_prefetch=0,
            grid=grid,
            in_specs=[content_spec, style_spec,
                      mat_spec, vec_spec,     # wf, bf
                      mat_spec, vec_spec,     # wg, bg
                      mat_spec, vec_spec,     # wo, bo
                      mat_spec, vec_spec],    # wfc, bfc
            out_specs=out_spec,
            scratch_shapes=[
                pltpu.VMEM((C, 1), jnp.float32),   # content spatial sum
                pltpu.VMEM((C, 1), jnp.float32),   # content spatial sum-of-sq
                pltpu.VMEM((C, 1), jnp.float32),   # style spatial sum
                pltpu.VMEM((C, 1), jnp.float32),   # style spatial sum-of-sq
                pltpu.VMEM((C, 1), jnp.float32),   # g spatial sum
                pltpu.VMEM((C, 1), jnp.float32),   # g spatial sum-of-sq
                pltpu.VMEM((C, C), mxu_dtype),     # folded out_conv weight m
                pltpu.VMEM((C, 1), jnp.float32),   # folded out_conv bias
            ],
        ),
        compiler_params=pltpu.CompilerParams(
            dimension_semantics=("parallel", "arbitrary", "arbitrary"),
            # 64 MiB scoped limit: full-HW blocks fit on v5e/v6e; on v7x the
            # auto hw_block keeps the working set well under 64 MiB physical.
            vmem_limit_bytes=64 * 1024 * 1024,
        ),
        # NOTE: when the caller can donate the content buffer,
        # input_output_aliases={0: 0} saves an HBM allocation at production.
    )(content, style, wf, bf, wg, bg, wo, bo, wfc, bfc)

    # (B, C, HW) -> NCHW: pure reshape.
    return out.reshape(B, C, H, W)


def mccnet_reference(content_nchw, style_nchw, params):
    """Pure-JAX reference mirroring the PyTorch forward exactly."""
    eps = 1e-5
    B, C, H, W = content_nchw.shape
    HW = H * W

    def calc_normal(feat):
        flat = feat.reshape(B, C, HW)
        mean = flat.mean(axis=2, keepdims=True)
        var = jnp.sum((flat - mean) ** 2, axis=2, keepdims=True) / (HW - 1)
        return ((flat - mean) / jnp.sqrt(var + eps)).reshape(B, C, H, W)

    def conv1x1(x, w, b):
        return jnp.einsum("oi,bihw->bohw", w.reshape(C, C), x) + b.reshape(1, C, 1, 1)

    f_fc = conv1x1(calc_normal(content_nchw), params["wf"], params["bf"])
    g_fs = conv1x1(calc_normal(style_nchw), params["wg"], params["bg"])
    g_flat = g_fs.reshape(B, C, HW)
    g_sum = g_flat.sum(-1)                                  # (B, C)
    fc_s = jnp.sum(g_flat * g_flat, axis=-1) / g_sum        # (B, C)
    fc_s = fc_s @ params["wfc"].T + params["bfc"]           # (B, C)
    out = f_fc * fc_s[:, :, None, None]
    out = conv1x1(out, params["wo"], params["bo"])
    return content_nchw + out


def make_params(key, C):
    keys = jax.random.split(key, 10)
    scale = 1.0 / jnp.sqrt(C)
    return {
        "wf": jax.random.normal(keys[0], (C, C, 1, 1), jnp.float32) * scale,
        "bf": jax.random.normal(keys[1], (C,), jnp.float32) * 0.1,
        "wg": jax.random.normal(keys[2], (C, C, 1, 1), jnp.float32) * scale,
        # keep g's bias away from zero so sum_hw(g) (the FC_S denominator)
        # stays well-conditioned for the numeric check
        "bg": 0.5 + 0.1 * jax.random.normal(keys[3], (C,), jnp.float32),
        "wo": jax.random.normal(keys[4], (C, C, 1, 1), jnp.float32) * scale,
        "bo": jax.random.normal(keys[5], (C,), jnp.float32) * 0.1,
        "wfc": jax.random.normal(keys[6], (C, C), jnp.float32) * scale,
        "bfc": jax.random.normal(keys[7], (C,), jnp.float32) * 0.1,
        # MCCNet.h is defined in __init__ but unused in forward:
        "wh": jax.random.normal(keys[8], (C, C, 1, 1), jnp.float32) * scale,
        "bh": jax.random.normal(keys[9], (C,), jnp.float32) * 0.1,
    }


if __name__ == "__main__":
    B, C, H, W = 2, 32, 16, 16   # small shapes; in_dim = C = 32
    key = jax.random.PRNGKey(0)
    k_c, k_s, k_p = jax.random.split(key, 3)
    content = jax.random.normal(k_c, (B, C, H, W), jnp.float32)
    style = jax.random.normal(k_s, (B, C, H, W), jnp.float32)
    params = make_params(k_p, C)

    ref = jax.block_until_ready(mccnet_reference(content, style, params))

    # 1) f32 MXU + forced HW tiling (2 tiles of 128): tight check of the
    #    phased / tiled accumulation logic.
    out_f32 = jax.block_until_ready(
        mccnet_forward(content, style, params, hw_block=128, use_bf16=False))
    assert out_f32.shape == (B, C, H, W)
    assert jnp.allclose(out_f32, ref, rtol=5e-3, atol=5e-3), float(
        jnp.max(jnp.abs(out_f32 - ref)))

    # 2) default production config (bf16 MXU operands, auto HW block).
    #    Tolerance loosened for the bf16 mantissa on the (C,C)@(C,HW) matmuls.
    out = jax.block_until_ready(mccnet_forward(content, style, params))
    assert out.shape == (B, C, H, W)
    assert jnp.allclose(out, ref, rtol=2e-2, atol=1e-1), float(
        jnp.max(jnp.abs(out - ref)))

    # 3) bf16 + forced HW tiling (exercises the production v7x path).
    out_t = jax.block_until_ready(
        mccnet_forward(content, style, params, hw_block=128))
    assert jnp.allclose(out_t, ref, rtol=2e-2, atol=1e-1), float(
        jnp.max(jnp.abs(out_t - ref)))

    print("KERNEL_OK")
</pallas_src>

<mosaic_0001>
module attributes {stable_mosaic.version = 11 : i64} {
  func.func @mccnet_kernel(%arg0: i32, %arg1: i32, %arg2: i32, %arg3: memref<1x32x128xf32, #tpu.memory_space<vmem>>, %arg4: memref<1x32x128xf32, #tpu.memory_space<vmem>>, %arg5: memref<32x32xf32, #tpu.memory_space<vmem>>, %arg6: memref<32x1xf32, #tpu.memory_space<vmem>>, %arg7: memref<32x32xf32, #tpu.memory_space<vmem>>, %arg8: memref<32x1xf32, #tpu.memory_space<vmem>>, %arg9: memref<32x32xf32, #tpu.memory_space<vmem>>, %arg10: memref<32x1xf32, #tpu.memory_space<vmem>>, %arg11: memref<32x32xf32, #tpu.memory_space<vmem>>, %arg12: memref<32x1xf32, #tpu.memory_space<vmem>>, %arg13: memref<1x32x128xf32, #tpu.memory_space<vmem>>, %arg14: memref<32x1xf32, #tpu.memory_space<vmem>>, %arg15: memref<32x1xf32, #tpu.memory_space<vmem>>, %arg16: memref<32x1xf32, #tpu.memory_space<vmem>>, %arg17: memref<32x1xf32, #tpu.memory_space<vmem>>, %arg18: memref<32x1xf32, #tpu.memory_space<vmem>>, %arg19: memref<32x1xf32, #tpu.memory_space<vmem>>, %arg20: memref<32x32xf32, #tpu.memory_space<vmem>>, %arg21: memref<32x1xf32, #tpu.memory_space<vmem>>) attributes {dimension_semantics = [#tpu.dimension_semantics<parallel>, #tpu.dimension_semantics<arbitrary>, #tpu.dimension_semantics<arbitrary>], iteration_bounds = array<i64: 2, 3, 2>, scalar_prefetch = 0 : i64, scratch_operands = 8 : i64, tpu.core_type = #tpu.core_type<tc>, window_params = [{transform_indices = @transform_0, window_bounds = array<i64: 1, 32, 128>}, {transform_indices = @transform_1, window_bounds = array<i64: 1, 32, 128>}, {pipeline_mode = #tpu.pipeline_mode<synchronous>, transform_indices = @transform_2, window_bounds = array<i64: 32, 32>}, {pipeline_mode = #tpu.pipeline_mode<synchronous>, transform_indices = @transform_3, window_bounds = array<i64: 32, 1>}, {pipeline_mode = #tpu.pipeline_mode<synchronous>, transform_indices = @transform_4, window_bounds = array<i64: 32, 32>}, {pipeline_mode = #tpu.pipeline_mode<synchronous>, transform_indices = @transform_5, window_bounds = array<i64: 32, 1>}, {pipeline_mode = #tpu.pipeline_mode<synchronous>, transform_indices = @transform_6, window_bounds = array<i64: 32, 32>}, {pipeline_mode = #tpu.pipeline_mode<synchronous>, transform_indices = @transform_7, window_bounds = array<i64: 32, 1>}, {pipeline_mode = #tpu.pipeline_mode<synchronous>, transform_indices = @transform_8, window_bounds = array<i64: 32, 32>}, {pipeline_mode = #tpu.pipeline_mode<synchronous>, transform_indices = @transform_9, window_bounds = array<i64: 32, 1>}, {transform_indices = @transform_10, window_bounds = array<i64: 1, 32, 128>}]} {
    %c0_i32 = arith.constant 0 : i32
    %0 = arith.cmpi eq, %arg1, %c0_i32 : i32
    %1 = arith.extui %0 : i1 to i32
    %c0_i32_0 = arith.constant 0 : i32
    %2 = arith.cmpi ne, %1, %c0_i32_0 : i32
    scf.if %2 {
      %c0_i32_3 = arith.constant 0 : i32
      %9 = arith.cmpi eq, %arg2, %c0_i32_3 : i32
      %10 = arith.extui %9 : i1 to i32
      %c0_i32_4 = arith.constant 0 : i32
      %11 = arith.cmpi ne, %10, %c0_i32_4 : i32
      scf.if %11 {
        %cst_29 = arith.constant 0.000000e+00 : f32
        %38 = vector.broadcast %cst_29 : f32 to vector<32x1xf32>
        %c0_30 = arith.constant 0 : index
        %c0_31 = arith.constant 0 : index
        %39 = vector.load %arg14[%c0_30, %c0_31] : memref<32x1xf32, #tpu.memory_space<vmem>>, vector<32x1xf32>
        tpu.vector_store %arg14[%c0_30, %c0_31], %38 {strides = array<i32>} : memref<32x1xf32, #tpu.memory_space<vmem>>, vector<32x1xf32>,
        %cst_32 = arith.constant 0.000000e+00 : f32
        %40 = vector.broadcast %cst_32 : f32 to vector<32x1xf32>
        %c0_33 = arith.constant 0 : index
        %c0_34 = arith.constant 0 : index
        %41 = vector.load %arg15[%c0_33, %c0_34] : memref<32x1xf32, #tpu.memory_space<vmem>>, vector<32x1xf32>
        tpu.vector_store %arg15[%c0_33, %c0_34], %40 {strides = array<i32>} : memref<32x1xf32, #tpu.memory_space<vmem>>, vector<32x1xf32>,
        %cst_35 = arith.constant 0.000000e+00 : f32
        %42 = vector.broadcast %cst_35 : f32 to vector<32x1xf32>
        %c0_36 = arith.constant 0 : index
        %c0_37 = arith.constant 0 : index
        %43 = vector.load %arg16[%c0_36, %c0_37] : memref<32x1xf32, #tpu.memory_space<vmem>>, vector<32x1xf32>
        tpu.vector_store %arg16[%c0_36, %c0_37], %42 {strides = array<i32>} : memref<32x1xf32, #tpu.memory_space<vmem>>, vector<32x1xf32>,
        %cst_38 = arith.constant 0.000000e+00 : f32
        %44 = vector.broadcast %cst_38 : f32 to vector<32x1xf32>
        %c0_39 = arith.constant 0 : index
        %c0_40 = arith.constant 0 : index
        %45 = vector.load %arg17[%c0_39, %c0_40] : memref<32x1xf32, #tpu.memory_space<vmem>>, vector<32x1xf32>
        tpu.vector_store %arg17[%c0_39, %c0_40], %44 {strides = array<i32>} : memref<32x1xf32, #tpu.memory_space<vmem>>, vector<32x1xf32>,
        %cst_41 = arith.constant 0.000000e+00 : f32
        %46 = vector.broadcast %cst_41 : f32 to vector<32x1xf32>
        %c0_42 = arith.constant 0 : index
        %c0_43 = arith.constant 0 : index
        %47 = vector.load %arg18[%c0_42, %c0_43] : memref<32x1xf32, #tpu.memory_space<vmem>>, vector<32x1xf32>
        tpu.vector_store %arg18[%c0_42, %c0_43], %46 {strides = array<i32>} : memref<32x1xf32, #tpu.memory_space<vmem>>, vector<32x1xf32>,
        %cst_44 = arith.constant 0.000000e+00 : f32
        %48 = vector.broadcast %cst_44 : f32 to vector<32x1xf32>
        %c0_45 = arith.constant 0 : index
        %c0_46 = arith.constant 0 : index
        %49 = vector.load %arg19[%c0_45, %c0_46] : memref<32x1xf32, #tpu.memory_space<vmem>>, vector<32x1xf32>
        tpu.vector_store %arg19[%c0_45, %c0_46], %48 {strides = array<i32>} : memref<32x1xf32, #tpu.memory_space<vmem>>, vector<32x1xf32>,
      } else {
      }
      %c0 = arith.constant 0 : index
      %c0_5 = arith.constant 0 : index
      %c0_6 = arith.constant 0 : index
      %12 = vector.load %arg3[%c0, %c0_5, %c0_6] : memref<1x32x128xf32, #tpu.memory_space<vmem>>, vector<1x32x128xf32>
      %13 = vector.shape_cast %12 : vector<1x32x128xf32> to vector<32x128xf32>
      %c0_7 = arith.constant 0 : index
      %c0_8 = arith.constant 0 : index
      %c0_9 = arith.constant 0 : index
      %14 = vector.load %arg4[%c0_7, %c0_8, %c0_9] : memref<1x32x128xf32, #tpu.memory_space<vmem>>, vector<1x32x128xf32>
      %15 = vector.shape_cast %14 : vector<1x32x128xf32> to vector<32x128xf32>
      %c0_10 = arith.constant 0 : index
      %c0_11 = arith.constant 0 : index
      %16 = vector.load %arg14[%c0_10, %c0_11] : memref<32x1xf32, #tpu.memory_space<vmem>>, vector<32x1xf32>
      %cst = arith.constant dense<0.000000e+00> : vector<32xf32>
      %17 = vector.multi_reduction <add>, %13, %cst [1] : vector<32x128xf32> to vector<32xf32>
      %18 = vector.shape_cast %17 : vector<32xf32> to vector<32x1xf32>
      %19 = arith.addf %16, %18 : vector<32x1xf32>
      %c0_12 = arith.constant 0 : index
      %c0_13 = arith.constant 0 : index
      %20 = vector.load %arg14[%c0_12, %c0_13] : memref<32x1xf32, #tpu.memory_space<vmem>>, vector<32x1xf32>
      tpu.vector_store %arg14[%c0_12, %c0_13], %19 {strides = array<i32>} : memref<32x1xf32, #tpu.memory_space<vmem>>, vector<32x1xf32>,
      %c0_14 = arith.constant 0 : index
      %c0_15 = arith.constant 0 : index
      %21 = vector.load %arg15[%c0_14, %c0_15] : memref<32x1xf32, #tpu.memory_space<vmem>>, vector<32x1xf32>
      %22 = arith.mulf %13, %13 : vector<32x128xf32>
      %cst_16 = arith.constant dense<0.000000e+00> : vector<32xf32>
      %23 = vector.multi_reduction <add>, %22, %cst_16 [1] : vector<32x128xf32> to vector<32xf32>
      %24 = vector.shape_cast %23 : vector<32xf32> to vector<32x1xf32>
      %25 = arith.addf %21, %24 : vector<32x1xf32>
      %c0_17 = arith.constant 0 : index
      %c0_18 = arith.constant 0 : index
      %26 = vector.load %arg15[%c0_17, %c0_18] : memref<32x1xf32, #tpu.memory_space<vmem>>, vector<32x1xf32>
      tpu.vector_store %arg15[%c0_17, %c0_18], %25 {strides = array<i32>} : memref<32x1xf32, #tpu.memory_space<vmem>>, vector<32x1xf32>,
      %c0_19 = arith.constant 0 : index
      %c0_20 = arith.constant 0 : index
      %27 = vector.load %arg16[%c0_19, %c0_20] : memref<32x1xf32, #tpu.memory_space<vmem>>, vector<32x1xf32>
      %cst_21 = arith.constant dense<0.000000e+00> : vector<32xf32>
      %28 = vector.multi_reduction <add>, %15, %cst_21 [1] : vector<32x128xf32> to vector<32xf32>
      %29 = vector.shape_cast %28 : vector<32xf32> to vector<32x1xf32>
      %30 = arith.addf %27, %29 : vector<32x1xf32>
      %c0_22 = arith.constant 0 : index
      %c0_23 = arith.constant 0 : index
      %31 = vector.load %arg16[%c0_22, %c0_23] : memref<32x1xf32, #tpu.memory_space<vmem>>, vector<32x1xf32>
      tpu.vector_store %arg16[%c0_22, %c0_23], %30 {strides = array<i32>} : memref<32x1xf32, #tpu.memory_space<vmem>>, vector<32x1xf32>,
      %c0_24 = arith.constant 0 : index
      %c0_25 = arith.constant 0 : index
      %32 = vector.load %arg17[%c0_24, %c0_25] : memref<32x1xf32, #tpu.memory_space<vmem>>, vector<32x1xf32>
      %33 = arith.mulf %15, %15 : vector<32x128xf32>
      %cst_26 = arith.constant dense<0.000000e+00> : vector<32xf32>
      %34 = vector.multi_reduction <add>, %33, %cst_26 [1] : vector<32x128xf32> to vector<32xf32>
      %35 = vector.shape_cast %34 : vector<32xf32> to vector<32x1xf32>
      %36 = arith.addf %32, %35 : vector<32x1xf32>
      %c0_27 = arith.constant 0 : index
      %c0_28 = arith.constant 0 : index
      %37 = vector.load %arg17[%c0_27, %c0_28] : memref<32x1xf32, #tpu.memory_space<vmem>>, vector<32x1xf32>
      tpu.vector_store %arg17[%c0_27, %c0_28], %36 {strides = array<i32>} : memref<32x1xf32, #tpu.memory_space<vmem>>, vector<32x1xf32>,
    } else {
    }
    %c1_i32 = arith.constant 1 : i32
    %3 = arith.cmpi eq, %arg1, %c1_i32 : i32
    %4 = arith.extui %3 : i1 to i32
    %c0_i32_1 = arith.constant 0 : i32
    %5 = arith.cmpi ne, %4, %c0_i32_1 : i32
    scf.if %5 {
      %c0 = arith.constant 0 : index
      %c0_3 = arith.constant 0 : index
      %9 = vector.load %arg16[%c0, %c0_3] : memref<32x1xf32, #tpu.memory_space<vmem>>, vector<32x1xf32>
      %c0_4 = arith.constant 0 : index
      %c0_5 = arith.constant 0 : index
      %10 = vector.load %arg17[%c0_4, %c0_5] : memref<32x1xf32, #tpu.memory_space<vmem>>, vector<32x1xf32>
      %cst = arith.constant 3.906250e-03 : f32
      %11 = vector.broadcast %cst : f32 to vector<32x1xf32>
      %12 = arith.mulf %9, %11 : vector<32x1xf32>
      %13 = arith.mulf %9, %12 : vector<32x1xf32>
      %14 = arith.subf %10, %13 : vector<32x1xf32>
      %cst_6 = arith.constant 0.00392156886 : f32
      %15 = vector.broadcast %cst_6 : f32 to vector<32x1xf32>
      %16 = arith.mulf %14, %15 : vector<32x1xf32>
      %cst_7 = arith.constant 0.000000e+00 : f32
      %17 = vector.broadcast %cst_7 : f32 to vector<32x1xf32>
      %18 = arith.maximumf %16, %17 : vector<32x1xf32>
      %cst_8 = arith.constant 9.99999974E-6 : f32
      %19 = vector.broadcast %cst_8 : f32 to vector<32x1xf32>
      %20 = arith.addf %18, %19 : vector<32x1xf32>
      %21 = math.rsqrt %20 : vector<32x1xf32>
      %c0_9 = arith.constant 0 : index
      %c0_10 = arith.constant 0 : index
      %c0_11 = arith.constant 0 : index
      %22 = vector.load %arg4[%c0_9, %c0_10, %c0_11] : memref<1x32x128xf32, #tpu.memory_space<vmem>>, vector<1x32x128xf32>
      %23 = vector.shape_cast %22 : vector<1x32x128xf32> to vector<32x128xf32>
      %24 = vector.broadcast %12 : vector<32x1xf32> to vector<32x128xf32>
      %25 = arith.subf %23, %24 : vector<32x128xf32>
      %26 = vector.broadcast %21 : vector<32x1xf32> to vector<32x128xf32>
      %27 = arith.mulf %25, %26 : vector<32x128xf32>
      %c0_12 = arith.constant 0 : index
      %c0_13 = arith.constant 0 : index
      %28 = vector.load %arg7[%c0_12, %c0_13] : memref<32x32xf32, #tpu.memory_space<vmem>>, vector<32x32xf32>
      %cst_14 = arith.constant dense<0.000000e+00> : vector<32x128xf32>
      %29 = tpu.matmul %28, %27, %cst_14 {dimension_numbers = #tpu.dot_dimension_numbers<[1], [0], [0], [1], [0, 0, 1, 1], [], []>} : vector<32x32xf32>, vector<32x128xf32>, vector<32x128xf32> -> vector<32x128xf32>
      %c0_15 = arith.constant 0 : index
      %c0_16 = arith.constant 0 : index
      %30 = vector.load %arg8[%c0_15, %c0_16] : memref<32x1xf32, #tpu.memory_space<vmem>>, vector<32x1xf32>
      %31 = vector.broadcast %30 : vector<32x1xf32> to vector<32x128xf32>
      %32 = arith.addf %29, %31 : vector<32x128xf32>
      %c0_17 = arith.constant 0 : index
      %c0_18 = arith.constant 0 : index
      %33 = vector.load %arg18[%c0_17, %c0_18] : memref<32x1xf32, #tpu.memory_space<vmem>>, vector<32x1xf32>
      %cst_19 = arith.constant dense<0.000000e+00> : vector<32xf32>
      %34 = vector.multi_reduction <add>, %32, %cst_19 [1] : vector<32x128xf32> to vector<32xf32>
      %35 = vector.shape_cast %34 : vector<32xf32> to vector<32x1xf32>
      %36 = arith.addf %33, %35 : vector<32x1xf32>
      %c0_20 = arith.constant 0 : index
      %c0_21 = arith.constant 0 : index
      %37 = vector.load %arg18[%c0_20, %c0_21] : memref<32x1xf32, #tpu.memory_space<vmem>>, vector<32x1xf32>
      tpu.vector_store %arg18[%c0_20, %c0_21], %36 {strides = array<i32>} : memref<32x1xf32, #tpu.memory_space<vmem>>, vector<32x1xf32>,
      %c0_22 = arith.constant 0 : index
      %c0_23 = arith.constant 0 : index
      %38 = vector.load %arg19[%c0_22, %c0_23] : memref<32x1xf32, #tpu.memory_space<vmem>>, vector<32x1xf32>
      %39 = arith.mulf %32, %32 : vector<32x128xf32>
      %cst_24 = arith.constant dense<0.000000e+00> : vector<32xf32>
      %40 = vector.multi_reduction <add>, %39, %cst_24 [1] : vector<32x128xf32> to vector<32xf32>
      %41 = vector.shape_cast %40 : vector<32xf32> to vector<32x1xf32>
      %42 = arith.addf %38, %41 : vector<32x1xf32>
      %c0_25 = arith.constant 0 : index
      %c0_26 = arith.constant 0 : index
      %43 = vector.load %arg19[%c0_25, %c0_26] : memref<32x1xf32, #tpu.memory_space<vmem>>, vector<32x1xf32>
      tpu.vector_store %arg19[%c0_25, %c0_26], %42 {strides = array<i32>} : memref<32x1xf32, #tpu.memory_space<vmem>>, vector<32x1xf32>,
      %c1_i32_27 = arith.constant 1 : i32
      %44 = arith.cmpi eq, %arg2, %c1_i32_27 : i32
      %45 = arith.extui %44 : i1 to i32
      %c0_i32_28 = arith.constant 0 : i32
      %46 = arith.cmpi ne, %45, %c0_i32_28 : i32
      scf.if %46 {
        %c0_29 = arith.constant 0 : index
        %c0_30 = arith.constant 0 : index
        %47 = vector.load %arg19[%c0_29, %c0_30] : memref<32x1xf32, #tpu.memory_space<vmem>>, vector<32x1xf32>
        %c0_31 = arith.constant 0 : index
        %c0_32 = arith.constant 0 : index
        %48 = vector.load %arg18[%c0_31, %c0_32] : memref<32x1xf32, #tpu.memory_space<vmem>>, vector<32x1xf32>
        %49 = arith.divf %47, %48 : vector<32x1xf32>
        %c0_33 = arith.constant 0 : index
        %c0_34 = arith.constant 0 : index
        %50 = vector.load %arg11[%c0_33, %c0_34] : memref<32x32xf32, #tpu.memory_space<vmem>>, vector<32x32xf32>
        %cst_35 = arith.constant dense<0.000000e+00> : vector<32x1xf32>
        %51 = tpu.matmul %50, %49, %cst_35 {dimension_numbers = #tpu.dot_dimension_numbers<[1], [0], [0], [1], [0, 0, 1, 1], [], []>} : vector<32x32xf32>, vector<32x1xf32>, vector<32x1xf32> -> vector<32x1xf32>
        %c0_36 = arith.constant 0 : index
        %c0_37 = arith.constant 0 : index
        %52 = vector.load %arg12[%c0_36, %c0_37] : memref<32x1xf32, #tpu.memory_space<vmem>>, vector<32x1xf32>
        %53 = arith.addf %51, %52 : vector<32x1xf32>
        %c0_38 = arith.constant 0 : index
        %c0_39 = arith.constant 0 : index
        %54 = vector.load %arg9[%c0_38, %c0_39] : memref<32x32xf32, #tpu.memory_space<vmem>>, vector<32x32xf32>
        %c0_40 = arith.constant 0 : index
        %c0_41 = arith.constant 0 : index
        %55 = vector.load %arg5[%c0_40, %c0_41] : memref<32x32xf32, #tpu.memory_space<vmem>>, vector<32x32xf32>
        %56 = vector.broadcast %53 : vector<32x1xf32> to vector<32x32xf32>
        %57 = arith.mulf %56, %55 : vector<32x32xf32>
        %cst_42 = arith.constant dense<0.000000e+00> : vector<32x32xf32>
        %58 = tpu.matmul %54, %57, %cst_42 {dimension_numbers = #tpu.dot_dimension_numbers<[1], [0], [0], [1], [0, 0, 1, 1], [], []>} : vector<32x32xf32>, vector<32x32xf32>, vector<32x32xf32> -> vector<32x32xf32>
        %c0_43 = arith.constant 0 : index
        %c0_44 = arith.constant 0 : index
        %59 = vector.load %arg20[%c0_43, %c0_44] : memref<32x32xf32, #tpu.memory_space<vmem>>, vector<32x32xf32>
        tpu.vector_store %arg20[%c0_43, %c0_44], %58 {strides = array<i32>} : memref<32x32xf32, #tpu.memory_space<vmem>>, vector<32x32xf32>,
        %c0_45 = arith.constant 0 : index
        %c0_46 = arith.constant 0 : index
        %60 = vector.load %arg9[%c0_45, %c0_46] : memref<32x32xf32, #tpu.memory_space<vmem>>, vector<32x32xf32>
        %c0_47 = arith.constant 0 : index
        %c0_48 = arith.constant 0 : index
        %61 = vector.load %arg6[%c0_47, %c0_48] : memref<32x1xf32, #tpu.memory_space<vmem>>, vector<32x1xf32>
        %62 = arith.mulf %53, %61 : vector<32x1xf32>
        %cst_49 = arith.constant dense<0.000000e+00> : vector<32x1xf32>
        %63 = tpu.matmul %60, %62, %cst_49 {dimension_numbers = #tpu.dot_dimension_numbers<[1], [0], [0], [1], [0, 0, 1, 1], [], []>} : vector<32x32xf32>, vector<32x1xf32>, vector<32x1xf32> -> vector<32x1xf32>
        %c0_50 = arith.constant 0 : index
        %c0_51 = arith.constant 0 : index
        %64 = vector.load %arg10[%c0_50, %c0_51] : memref<32x1xf32, #tpu.memory_space<vmem>>, vector<32x1xf32>
        %65 = arith.addf %63, %64 : vector<32x1xf32>
        %c0_52 = arith.constant 0 : index
        %c0_53 = arith.constant 0 : index
        %66 = vector.load %arg21[%c0_52, %c0_53] : memref<32x1xf32, #tpu.memory_space<vmem>>, vector<32x1xf32>
        tpu.vector_store %arg21[%c0_52, %c0_53], %65 {strides = array<i32>} : memref<32x1xf32, #tpu.memory_space<vmem>>, vector<32x1xf32>,
      } else {
      }
    } else {
    }
    %c2_i32 = arith.constant 2 : i32
    %6 = arith.cmpi eq, %arg1, %c2_i32 : i32
    %7 = arith.extui %6 : i1 to i32
    %c0_i32_2 = arith.constant 0 : i32
    %8 = arith.cmpi ne, %7, %c0_i32_2 : i32
    scf.if %8 {
      %c0 = arith.constant 0 : index
      %c0_3 = arith.constant 0 : index
      %9 = vector.load %arg14[%c0, %c0_3] : memref<32x1xf32, #tpu.memory_space<vmem>>, vector<32x1xf32>
      %c0_4 = arith.constant 0 : index
      %c0_5 = arith.constant 0 : index
      %10 = vector.load %arg15[%c0_4, %c0_5] : memref<32x1xf32, #tpu.memory_space<vmem>>, vector<32x1xf32>
      %cst = arith.constant 3.906250e-03 : f32
      %11 = vector.broadcast %cst : f32 to vector<32x1xf32>
      %12 = arith.mulf %9, %11 : vector<32x1xf32>
      %13 = arith.mulf %9, %12 : vector<32x1xf32>
      %14 = arith.subf %10, %13 : vector<32x1xf32>
      %cst_6 = arith.constant 0.00392156886 : f32
      %15 = vector.broadcast %cst_6 : f32 to vector<32x1xf32>
      %16 = arith.mulf %14, %15 : vector<32x1xf32>
      %cst_7 = arith.constant 0.000000e+00 : f32
      %17 = vector.broadcast %cst_7 : f32 to vector<32x1xf32>
      %18 = arith.maximumf %16, %17 : vector<32x1xf32>
      %cst_8 = arith.constant 9.99999974E-6 : f32
      %19 = vector.broadcast %cst_8 : f32 to vector<32x1xf32>
      %20 = arith.addf %18, %19 : vector<32x1xf32>
      %21 = math.rsqrt %20 : vector<32x1xf32>
      %c0_9 = arith.constant 0 : index
      %c0_10 = arith.constant 0 : index
      %c0_11 = arith.constant 0 : index
      %22 = vector.load %arg3[%c0_9, %c0_10, %c0_11] : memref<1x32x128xf32, #tpu.memory_space<vmem>>, vector<1x32x128xf32>
      %23 = vector.shape_cast %22 : vector<1x32x128xf32> to vector<32x128xf32>
      %24 = vector.broadcast %12 : vector<32x1xf32> to vector<32x128xf32>
      %25 = arith.subf %23, %24 : vector<32x128xf32>
      %26 = vector.broadcast %21 : vector<32x1xf32> to vector<32x128xf32>
      %27 = arith.mulf %25, %26 : vector<32x128xf32>
      %c0_12 = arith.constant 0 : index
      %c0_13 = arith.constant 0 : index
      %28 = vector.load %arg20[%c0_12, %c0_13] : memref<32x32xf32, #tpu.memory_space<vmem>>, vector<32x32xf32>
      %cst_14 = arith.constant dense<0.000000e+00> : vector<32x128xf32>
      %29 = tpu.matmul %28, %27, %cst_14 {dimension_numbers = #tpu.dot_dimension_numbers<[1], [0], [0], [1], [0, 0, 1, 1], [], []>} : vector<32x32xf32>, vector<32x128xf32>, vector<32x128xf32> -> vector<32x128xf32>
      %c0_15 = arith.constant 0 : index
      %c0_16 = arith.constant 0 : index
      %30 = vector.load %arg21[%c0_15, %c0_16] : memref<32x1xf32, #tpu.memory_space<vmem>>, vector<32x1xf32>
      %31 = vector.broadcast %30 : vector<32x1xf32> to vector<32x128xf32>
      %32 = arith.addf %29, %31 : vector<32x128xf32>
      %33 = arith.addf %23, %32 : vector<32x128xf32>
      %c0_17 = arith.constant 0 : index
      %c0_18 = arith.constant 0 : index
      %c0_19 = arith.constant 0 : index
      %34 = vector.load %arg13[%c0_17, %c0_18, %c0_19] : memref<1x32x128xf32, #tpu.memory_space<vmem>>, vector<1x32x128xf32>
      %35 = vector.shape_cast %34 : vector<1x32x128xf32> to vector<32x128xf32>
      %36 = vector.shape_cast %33 : vector<32x128xf32> to vector<1x32x128xf32>
      tpu.vector_store %arg13[%c0_17, %c0_18, %c0_19], %36 {strides = array<i32>} : memref<1x32x128xf32, #tpu.memory_space<vmem>>, vector<1x32x128xf32>,
    } else {
    }
    return
  }
  func.func @transform_0(%arg0: i32, %arg1: i32, %arg2: i32) -> (i32, i32, i32) {
    %c1_i32 = arith.constant 1 : i32
    %0 = arith.cmpi eq, %arg1, %c1_i32 : i32
    %c0_i32 = arith.constant 0 : i32
    %1 = arith.select %0, %c0_i32, %arg2 : i32
    %c0_i32_0 = arith.constant 0 : i32
    %c0_i32_1 = arith.constant 0 : i32
    return %arg0, %c0_i32_0, %1 : i32, i32, i32
  }
  func.func @transform_1(%arg0: i32, %arg1: i32, %arg2: i32) -> (i32, i32, i32) {
    %c2_i32 = arith.constant 2 : i32
    %0 = arith.cmpi eq, %arg1, %c2_i32 : i32
    %c0_i32 = arith.constant 0 : i32
    %1 = arith.select %0, %c0_i32, %arg2 : i32
    %c0_i32_0 = arith.constant 0 : i32
    %c0_i32_1 = arith.constant 0 : i32
    return %arg0, %c0_i32_0, %1 : i32, i32, i32
  }
  func.func @transform_2(%arg0: i32, %arg1: i32, %arg2: i32) -> (i32, i32) {
    %c0_i32 = arith.constant 0 : i32
    %c0_i32_0 = arith.constant 0 : i32
    %c0_i32_1 = arith.constant 0 : i32
    return %c0_i32, %c0_i32_0 : i32, i32
  }
  func.func @transform_3(%arg0: i32, %arg1: i32, %arg2: i32) -> (i32, i32) {
    %c0_i32 = arith.constant 0 : i32
    %c0_i32_0 = arith.constant 0 : i32
    %c0_i32_1 = arith.constant 0 : i32
    return %c0_i32, %c0_i32_0 : i32, i32
  }
  func.func @transform_4(%arg0: i32, %arg1: i32, %arg2: i32) -> (i32, i32) {
    %c0_i32 = arith.constant 0 : i32
    %c0_i32_0 = arith.constant 0 : i32
    %c0_i32_1 = arith.constant 0 : i32
    return %c0_i32, %c0_i32_0 : i32, i32
  }
  func.func @transform_5(%arg0: i32, %arg1: i32, %arg2: i32) -> (i32, i32) {
    %c0_i32 = arith.constant 0 : i32
    %c0_i32_0 = arith.constant 0 : i32
    %c0_i32_1 = arith.constant 0 : i32
    return %c0_i32, %c0_i32_0 : i32, i32
  }
  func.func @transform_6(%arg0: i32, %arg1: i32, %arg2: i32) -> (i32, i32) {
    %c0_i32 = arith.constant 0 : i32
    %c0_i32_0 = arith.constant 0 : i32
    %c0_i32_1 = arith.constant 0 : i32
    return %c0_i32, %c0_i32_0 : i32, i32
  }
  func.func @transform_7(%arg0: i32, %arg1: i32, %arg2: i32) -> (i32, i32) {
    %c0_i32 = arith.constant 0 : i32
    %c0_i32_0 = arith.constant 0 : i32
    %c0_i32_1 = arith.constant 0 : i32
    return %c0_i32, %c0_i32_0 : i32, i32
  }
  func.func @transform_8(%arg0: i32, %arg1: i32, %arg2: i32) -> (i32, i32) {
    %c0_i32 = arith.constant 0 : i32
    %c0_i32_0 = arith.constant 0 : i32
    %c0_i32_1 = arith.constant 0 : i32
    return %c0_i32, %c0_i32_0 : i32, i32
  }
  func.func @transform_9(%arg0: i32, %arg1: i32, %arg2: i32) -> (i32, i32) {
    %c0_i32 = arith.constant 0 : i32
    %c0_i32_0 = arith.constant 0 : i32
    %c0_i32_1 = arith.constant 0 : i32
    return %c0_i32, %c0_i32_0 : i32, i32
  }
  func.func @transform_10(%arg0: i32, %arg1: i32, %arg2: i32) -> (i32, i32, i32) {
    %c2_i32 = arith.constant 2 : i32
    %0 = arith.cmpi eq, %arg1, %c2_i32 : i32
    %c0_i32 = arith.constant 0 : i32
    %1 = arith.select %0, %arg2, %c0_i32 : i32
    %c0_i32_0 = arith.constant 0 : i32
    %c0_i32_1 = arith.constant 0 : i32
    return %arg0, %c0_i32_0, %1 : i32, i32, i32
  }
}

</mosaic_0001>

<llo_original>
// kernel: mccnet_forward.1
$region0: #{mccnet_forward.1}
  #allocation0 [shape = 'u32[]', space=smem, size = 0x4, offset = 0x4, fixed_abs, tag = 'smem constant byte address 0x4 - core index']
  #allocation1 [shape = 'u32[72,128]{1,0:T(1,128)}', space=vmem, size = 0x9000, scoped, tag = 'internal scratch']
  #allocation2 [shape = 'f32[32,1]{1,0:T(8,128)}', space=vmem, size = 0x4000, scoped, tag = 'scratch operand']
  #allocation3 [shape = 'f32[32,1]{1,0:T(8,128)}', space=vmem, size = 0x4000, scoped, tag = 'scratch operand']
  #allocation4 [shape = 'f32[32,1]{1,0:T(8,128)}', space=vmem, size = 0x4000, scoped, tag = 'scratch operand']
  #allocation5 [shape = 'f32[32,1]{1,0:T(8,128)}', space=vmem, size = 0x4000, scoped, tag = 'scratch operand']
  #allocation6 [shape = 'f32[32,1]{1,0:T(8,128)}', space=vmem, size = 0x4000, scoped, tag = 'scratch operand']
  #allocation7 [shape = 'f32[32,1]{1,0:T(8,128)}', space=vmem, size = 0x4000, scoped, tag = 'scratch operand']
  #allocation8 [shape = 'f32[32,32]{1,0:T(8,128)}', space=vmem, size = 0x4000, scoped, tag = 'scratch operand']
  #allocation9 [shape = 'f32[32,1]{1,0:T(8,128)}', space=vmem, size = 0x4000, scoped, tag = 'scratch operand']
  %s0 = inlined_call_operand.vmem [shape: f32[2,32,256], index: 0, kind: input, shape index: {}]
  %s1 = inlined_call_operand.vmem [shape: f32[2,32,256], index: 1, kind: input, shape index: {}]
  %s2 = inlined_call_operand.vmem [shape: f32[32,32], index: 2, kind: input, shape index: {}]
  %s3 = inlined_call_operand.vmem [shape: f32[32,1], index: 3, kind: input, shape index: {}]
  %s4 = inlined_call_operand.vmem [shape: f32[32,32], index: 4, kind: input, shape index: {}]
  %s5 = inlined_call_operand.vmem [shape: f32[32,1], index: 5, kind: input, shape index: {}]
  %s6 = inlined_call_operand.vmem [shape: f32[32,32], index: 6, kind: input, shape index: {}]
  %s7 = inlined_call_operand.vmem [shape: f32[32,1], index: 7, kind: input, shape index: {}]
  %s8 = inlined_call_operand.vmem [shape: f32[32,32], index: 8, kind: input, shape index: {}]
  %s9 = inlined_call_operand.vmem [shape: f32[32,1], index: 9, kind: input, shape index: {}]
  %s10 = inlined_call_operand.vmem [shape: f32[2,32,256], index: 10, kind: output, shape index: {}]
  %s11 = sld [smem:[#allocation0]]
  $region203: #{mccnet_forward.1} parent=0
    _
  %s13 = ssub.s32 1, %s11
  %s14 = scalar_select 0, %s13, %s11
  $region1: #{mccnet_forward.1} parent=0
    #allocation10 [shape = 'u8[32768]{0}', space=vmem, size = 0x8000, scoped, tag = 'input window, operand 0']
    #allocation11 [shape = 'u8[32768]{0}', space=vmem, size = 0x8000, scoped, tag = 'input window, operand 1']
    #allocation12 [shape = 'u8[32768]{0}', space=vmem, size = 0x8000, scoped, tag = 'output window, operand 0']
    loop: start=0, step=1, limit=14
    $region2: #{mccnet_forward.1} parent=1 // loop_pre_header
      _
    $region3: #{mccnet_forward.1} parent=1 // loop_header
      %s16 = sphi 0, %s20
      %p17 = scmp.ge.s32.totalorder %s16, 14
      %s23 = sphi 0, %s42
      %s24 = sphi 0, %s38
      %s25 = sphi 0, %s34
      %s26 = sphi 0, %s23
      %s27 = sphi 0, %s24
      %s28 = sphi 0, %s25
      %s29 = sphi 0, %s26
      %s30 = sphi 0, %s27
      %s31 = sphi 0, %s28
      %s51 = sphi 0, %s53
      %s54 = sphi 0, %s51
      %s55 = sphi 0, %s54
      %s71 = sphi 0, %s55
      %s83 = sphi 0, %s85
      %s86 = sphi 0, %s83
      %s87 = sphi 0, %s86
      %s103 = sphi 0, %s87
      %s107 = sphi 0, %s107
      %s109 = sphi 0, %s107
      %s110 = sphi 0, %s109
      %s124 = sphi 0, %s110
      %s128 = sphi 0, %s128
      %s130 = sphi 0, %s128
      %s131 = sphi 0, %s130
      %s145 = sphi 0, %s131
      %s149 = sphi 0, %s149
      %s151 = sphi 0, %s149
      %s152 = sphi 0, %s151
      %s166 = sphi 0, %s152
      %s170 = sphi 0, %s170
      %s172 = sphi 0, %s170
      %s173 = sphi 0, %s172
      %s187 = sphi 0, %s173
      %s191 = sphi 0, %s191
      %s193 = sphi 0, %s191
      %s194 = sphi 0, %s193
      %s208 = sphi 0, %s194
      %s212 = sphi 0, %s212
      %s214 = sphi 0, %s212
      %s215 = sphi 0, %s214
      %s229 = sphi 0, %s215
      %s233 = sphi 0, %s233
      %s235 = sphi 0, %s233
      %s236 = sphi 0, %s235
      %s250 = sphi 0, %s236
      %s254 = sphi 0, %s254
      %s256 = sphi 0, %s254
      %s257 = sphi 0, %s256
      %s271 = sphi 0, %s257
      %s283 = sphi 0, %s285
      %s286 = sphi 0, %s283
      %s287 = sphi 0, %s286
      %s303 = sphi 0, %s287
    $region4: #{mccnet_forward.1} parent=1 // loop_header_branch
      %19 = sbr.rel (%p17) target = $region8
    $region5: #{mccnet_forward.1} parent=1 // loop_body
      %s21 = ssub.s32 %s16, 1
      %s22 = ssub.s32 %s16, 2
      %s32 = sadd.s32 1, %s25
      %p33 = scmp.ge.s32.totalorder %s32, 2
      %s34 = scalar_select %p33, 0, %s32
      %s35 = sadd.s32 1, %s24
      %s36 = scalar_select %p33, %s35, %s24
      %p37 = scmp.ge.s32.totalorder %s36, 3
      %s38 = scalar_select %p37, 0, %s36
      %s39 = sadd.s32 1, %s23
      %s40 = scalar_select %p37, %s39, %s23
      %p41 = scmp.ge.s32.totalorder %s40, 2
      %s42 = scalar_select %p41, 0, %s40
      %p43 = scmp.eq.s32.totalorder %s24, 1
      %s44 = scalar_select %p43, 0, %s25
      %p45 = scmp.eq.s32.totalorder %s38, 1
      %s46 = scalar_select %p45, 0, %s34
      %s47 = ssub.s32 %s23, %s42
      %s48 = ssub.s32 %s44, %s46
      %s49 = sor.u32 %s47, %s48
      %p50 = scmp.eq.s32.totalorder %s49, 0
      %s52 = sadd.s32 %s51, 1
      %s53 = scalar_select %p50, %s51, %s52
      %p56 = pneg %p50
      %p57 = scmp.eq.s32.totalorder %s16, 11
      %p58 = por %p56, %p57
      %p59 = scmp.ne.s32.totalorder %s51, %s54
      %p60 = scmp.eq.s32.totalorder %s16, 0
      %p61 = por %p59, %p60
      %p62 = scmp.ne.s32.totalorder %s51, %s54
      %p63 = scmp.eq.s32.totalorder %s21, 11
      %p64 = por %p62, %p63
      %p65 = scmp.ne.s32.totalorder %s54, %s55
      %p66 = scmp.eq.s32.totalorder %s21, 0
      %p67 = por %p65, %p66
      %p68 = scmp.ne.s32.totalorder %s54, %s55
      %p69 = scmp.eq.s32.totalorder %s22, 11
      %p70 = por %p68, %p69
      %p72 = scmp.ne.s32.totalorder %s55, %s71
      %p73 = scmp.eq.s32.totalorder %s22, 0
      %p74 = por %p72, %p73
      %p75 = scmp.eq.s32.totalorder %s24, 2
      %s76 = scalar_select %p75, 0, %s25
      %p77 = scmp.eq.s32.totalorder %s38, 2
      %s78 = scalar_select %p77, 0, %s34
      %s79 = ssub.s32 %s23, %s42
      %s80 = ssub.s32 %s76, %s78
      %s81 = sor.u32 %s79, %s80
      %p82 = scmp.eq.s32.totalorder %s81, 0
      %s84 = sadd.s32 %s83, 1
      %s85 = scalar_select %p82, %s83, %s84
      %p88 = pneg %p82
      %p89 = scmp.eq.s32.totalorder %s16, 11
      %p90 = por %p88, %p89
      %p91 = scmp.ne.s32.totalorder %s83, %s86
      %p92 = scmp.eq.s32.totalorder %s16, 0
      %p93 = por %p91, %p92
      %p94 = scmp.ne.s32.totalorder %s83, %s86
      %p95 = scmp.eq.s32.totalorder %s21, 11
      %p96 = por %p94, %p95
      %p97 = scmp.ne.s32.totalorder %s86, %s87
      %p98 = scmp.eq.s32.totalorder %s21, 0
      %p99 = por %p97, %p98
      %p100 = scmp.ne.s32.totalorder %s86, %s87
      %p101 = scmp.eq.s32.totalorder %s22, 11
      %p102 = por %p100, %p101
      %p104 = scmp.ne.s32.totalorder %s87, %s103
      %p105 = scmp.eq.s32.totalorder %s22, 0
      %p106 = por %p104, %p105
      %s108 = sadd.s32 %s107, 1
      %p111 = scmp.eq.s32.totalorder %s16, 11
      %p112 = scmp.ne.s32.totalorder %s107, %s109
      %p113 = scmp.eq.s32.totalorder %s16, 0
      %p114 = por %p112, %p113
      %p115 = scmp.ne.s32.totalorder %s107, %s109
      %p116 = scmp.eq.s32.totalorder %s21, 11
      %p117 = por %p115, %p116
      %p118 = scmp.ne.s32.totalorder %s109, %s110
      %p119 = scmp.eq.s32.totalorder %s21, 0
      %p120 = por %p118, %p119
      %p121 = scmp.ne.s32.totalorder %s109, %s110
      %p122 = scmp.eq.s32.totalorder %s22, 11
      %p123 = por %p121, %p122
      %p125 = scmp.ne.s32.totalorder %s110, %s124
      %p126 = scmp.eq.s32.totalorder %s22, 0
      %p127 = por %p125, %p126
      %s129 = sadd.s32 %s128, 1
      %p132 = scmp.eq.s32.totalorder %s16, 11
      %p133 = scmp.ne.s32.totalorder %s128, %s130
      %p134 = scmp.eq.s32.totalorder %s16, 0
      %p135 = por %p133, %p134
      %p136 = scmp.ne.s32.totalorder %s128, %s130
      %p137 = scmp.eq.s32.totalorder %s21, 11
      %p138 = por %p136, %p137
      %p139 = scmp.ne.s32.totalorder %s130, %s131
      %p140 = scmp.eq.s32.totalorder %s21, 0
      %p141 = por %p139, %p140
      %p142 = scmp.ne.s32.totalorder %s130, %s131
      %p143 = scmp.eq.s32.totalorder %s22, 11
      %p144 = por %p142, %p143
      %p146 = scmp.ne.s32.totalorder %s131, %s145
      %p147 = scmp.eq.s32.totalorder %s22, 0
      %p148 = por %p146, %p147
      %s150 = sadd.s32 %s149, 1
      %p153 = scmp.eq.s32.totalorder %s16, 11
      %p154 = scmp.ne.s32.totalorder %s149, %s151
      %p155 = scmp.eq.s32.totalorder %s16, 0
      %p156 = por %p154, %p155
      %p157 = scmp.ne.s32.totalorder %s149, %s151
      %p158 = scmp.eq.s32.totalorder %s21, 11
      %p159 = por %p157, %p158
      %p160 = scmp.ne.s32.totalorder %s151, %s152
      %p161 = scmp.eq.s32.totalorder %s21, 0
      %p162 = por %p160, %p161
      %p163 = scmp.ne.s32.totalorder %s151, %s152
      %p164 = scmp.eq.s32.totalorder %s22, 11
      %p165 = por %p163, %p164
      %p167 = scmp.ne.s32.totalorder %s152, %s166
      %p168 = scmp.eq.s32.totalorder %s22, 0
      %p169 = por %p167, %p168
      %s171 = sadd.s32 %s170, 1
      %p174 = scmp.eq.s32.totalorder %s16, 11
      %p175 = scmp.ne.s32.totalorder %s170, %s172
      %p176 = scmp.eq.s32.totalorder %s16, 0
      %p177 = por %p175, %p176
      %p178 = scmp.ne.s32.totalorder %s170, %s172
      %p179 = scmp.eq.s32.totalorder %s21, 11
      %p180 = por %p178, %p179
      %p181 = scmp.ne.s32.totalorder %s172, %s173
      %p182 = scmp.eq.s32.totalorder %s21, 0
      %p183 = por %p181, %p182
      %p184 = scmp.ne.s32.totalorder %s172, %s173
      %p185 = scmp.eq.s32.totalorder %s22, 11
      %p186 = por %p184, %p185
      %p188 = scmp.ne.s32.totalorder %s173, %s187
      %p189 = scmp.eq.s32.totalorder %s22, 0
      %p190 = por %p188, %p189
      %s192 = sadd.s32 %s191, 1
      %p195 = scmp.eq.s32.totalorder %s16, 11
      %p196 = scmp.ne.s32.totalorder %s191, %s193
      %p197 = scmp.eq.s32.totalorder %s16, 0
      %p198 = por %p196, %p197
      %p199 = scmp.ne.s32.totalorder %s191, %s193
      %p200 = scmp.eq.s32.totalorder %s21, 11
      %p201 = por %p199, %p200
      %p202 = scmp.ne.s32.totalorder %s193, %s194
      %p203 = scmp.eq.s32.totalorder %s21, 0
      %p204 = por %p202, %p203
      %p205 = scmp.ne.s32.totalorder %s193, %s194
      %p206 = scmp.eq.s32.totalorder %s22, 11
      %p207 = por %p205, %p206
      %p209 = scmp.ne.s32.totalorder %s194, %s208
      %p210 = scmp.eq.s32.totalorder %s22, 0
      %p211 = por %p209, %p210
      %s213 = sadd.s32 %s212, 1
      %p216 = scmp.eq.s32.totalorder %s16, 11
      %p217 = scmp.ne.s32.totalorder %s212, %s214
      %p218 = scmp.eq.s32.totalorder %s16, 0
      %p219 = por %p217, %p218
      %p220 = scmp.ne.s32.totalorder %s212, %s214
      %p221 = scmp.eq.s32.totalorder %s21, 11
      %p222 = por %p220, %p221
      %p223 = scmp.ne.s32.totalorder %s214, %s215
      %p224 = scmp.eq.s32.totalorder %s21, 0
      %p225 = por %p223, %p224
      %p226 = scmp.ne.s32.totalorder %s214, %s215
      %p227 = scmp.eq.s32.totalorder %s22, 11
      %p228 = por %p226, %p227
      %p230 = scmp.ne.s32.totalorder %s215, %s229
      %p231 = scmp.eq.s32.totalorder %s22, 0
      %p232 = por %p230, %p231
      %s234 = sadd.s32 %s233, 1
      %p237 = scmp.eq.s32.totalorder %s16, 11
      %p238 = scmp.ne.s32.totalorder %s233, %s235
      %p239 = scmp.eq.s32.totalorder %s16, 0
      %p240 = por %p238, %p239
      %p241 = scmp.ne.s32.totalorder %s233, %s235
      %p242 = scmp.eq.s32.totalorder %s21, 11
      %p243 = por %p241, %p242
      %p244 = scmp.ne.s32.totalorder %s235, %s236
      %p245 = scmp.eq.s32.totalorder %s21, 0
      %p246 = por %p244, %p245
      %p247 = scmp.ne.s32.totalorder %s235, %s236
      %p248 = scmp.eq.s32.totalorder %s22, 11
      %p249 = por %p247, %p248
      %p251 = scmp.ne.s32.totalorder %s236, %s250
      %p252 = scmp.eq.s32.totalorder %s22, 0
      %p253 = por %p251, %p252
      %s255 = sadd.s32 %s254, 1
      %p258 = scmp.eq.s32.totalorder %s16, 11
      %p259 = scmp.ne.s32.totalorder %s254, %s256
      %p260 = scmp.eq.s32.totalorder %s16, 0
      %p261 = por %p259, %p260
      %p262 = scmp.ne.s32.totalorder %s254, %s256
      %p263 = scmp.eq.s32.totalorder %s21, 11
      %p264 = por %p262, %p263
      %p265 = scmp.ne.s32.totalorder %s256, %s257
      %p266 = scmp.eq.s32.totalorder %s21, 0
      %p267 = por %p265, %p266
      %p268 = scmp.ne.s32.totalorder %s256, %s257
      %p269 = scmp.eq.s32.totalorder %s22, 11
      %p270 = por %p268, %p269
      %p272 = scmp.ne.s32.totalorder %s257, %s271
      %p273 = scmp.eq.s32.totalorder %s22, 0
      %p274 = por %p272, %p273
      %p275 = scmp.eq.s32.totalorder %s24, 2
      %s276 = scalar_select %p275, %s25, 0
      %p277 = scmp.eq.s32.totalorder %s38, 2
      %s278 = scalar_select %p277, %s34, 0
      %s279 = ssub.s32 %s23, %s42
      %s280 = ssub.s32 %s276, %s278
      %s281 = sor.u32 %s279, %s280
      %p282 = scmp.eq.s32.totalorder %s281, 0
      %s284 = sadd.s32 %s283, 1
      %s285 = scalar_select %p282, %s283, %s284
      %p288 = pneg %p282
      %p289 = scmp.eq.s32.totalorder %s16, 11
      %p290 = por %p288, %p289
      %p291 = scmp.ne.s32.totalorder %s283, %s286
      %p292 = scmp.eq.s32.totalorder %s16, 0
      %p293 = por %p291, %p292
      %p294 = scmp.ne.s32.totalorder %s283, %s286
      %p295 = scmp.eq.s32.totalorder %s21, 11
      %p296 = por %p294, %p295
      %p297 = scmp.ne.s32.totalorder %s286, %s287
      %p298 = scmp.eq.s32.totalorder %s21, 0
      %p299 = por %p297, %p298
      %p300 = scmp.ne.s32.totalorder %s286, %s287
      %p301 = scmp.eq.s32.totalorder %s22, 11
      %p302 = por %p300, %p301
      %p304 = scmp.ne.s32.totalorder %s287, %s303
      %p305 = scmp.eq.s32.totalorder %s22, 0
      %p306 = por %p304, %p305
      %p307 = scmp.le.s32.totalorder 1, %s16
      %p308 = scmp.lt.s32.totalorder %s16, 13
      %p309 = pnand %p307, %p308
      %p310 = pneg %p309
      // Predicated region
      $region9: #{mccnet_forward.1} parent=5 // pred_check
        _
      $region10: #{mccnet_forward.1} parent=5 // pred_check_branch
        %312 = sbr.rel (%p309) target = $region12
      $region11: #{mccnet_forward.1} parent=5 // pred_region
        %s313 = ssub.s32 %s16, 1
        // Predicated region
        $region13: #{mccnet_forward.1} parent=11 // pred_check
          %p314 = pneg %p120
        $region14: #{mccnet_forward.1} parent=11 // pred_check_branch
          %316 = sbr.rel (%p314) target = $region16
        $region15: #{mccnet_forward.1} parent=11 // pred_region
          _
        $region16: #{mccnet_forward.1} parent=11 // pred_fallthru
          _
        // Predicated region
        $region17: #{mccnet_forward.1} parent=11 // pred_check
          %p317 = pneg %p141
        $region18: #{mccnet_forward.1} parent=11 // pred_check_branch
          %319 = sbr.rel (%p317) target = $region20
        $region19: #{mccnet_forward.1} parent=11 // pred_region
          _
        $region20: #{mccnet_forward.1} parent=11 // pred_fallthru
          _
        // Predicated region
        $region21: #{mccnet_forward.1} parent=11 // pred_check
          %p320 = pneg %p162
        $region22: #{mccnet_forward.1} parent=11 // pred_check_branch
          %322 = sbr.rel (%p320) target = $region24
        $region23: #{mccnet_forward.1} parent=11 // pred_region
          _
        $region24: #{mccnet_forward.1} parent=11 // pred_fallthru
          _
        // Predicated region
        $region25: #{mccnet_forward.1} parent=11 // pred_check
          %p323 = pneg %p183
        $region26: #{mccnet_forward.1} parent=11 // pred_check_branch
          %325 = sbr.rel (%p323) target = $region28
        $region27: #{mccnet_forward.1} parent=11 // pred_region
          _
        $region28: #{mccnet_forward.1} parent=11 // pred_fallthru
          _
        // Predicated region
        $region29: #{mccnet_forward.1} parent=11 // pred_check
          %p326 = pneg %p204
        $region30: #{mccnet_forward.1} parent=11 // pred_check_branch
          %328 = sbr.rel (%p326) target = $region32
        $region31: #{mccnet_forward.1} parent=11 // pred_region
          _
        $region32: #{mccnet_forward.1} parent=11 // pred_fallthru
          _
        // Predicated region
        $region33: #{mccnet_forward.1} parent=11 // pred_check
          %p329 = pneg %p225
        $region34: #{mccnet_forward.1} parent=11 // pred_check_branch
          %331 = sbr.rel (%p329) target = $region36
        $region35: #{mccnet_forward.1} parent=11 // pred_region
          _
        $region36: #{mccnet_forward.1} parent=11 // pred_fallthru
          _
        // Predicated region
        $region37: #{mccnet_forward.1} parent=11 // pred_check
          %p332 = pneg %p246
        $region38: #{mccnet_forward.1} parent=11 // pred_check_branch
          %334 = sbr.rel (%p332) target = $region40
        $region39: #{mccnet_forward.1} parent=11 // pred_region
          _
        $region40: #{mccnet_forward.1} parent=11 // pred_fallthru
          _
        // Predicated region
        $region41: #{mccnet_forward.1} parent=11 // pred_check
          %p335 = pneg %p267
        $region42: #{mccnet_forward.1} parent=11 // pred_check_branch
          %337 = sbr.rel (%p335) target = $region44
        $region43: #{mccnet_forward.1} parent=11 // pred_region
          _
        $region44: #{mccnet_forward.1} parent=11 // pred_fallthru
          _
      $region12: #{mccnet_forward.1} parent=5 // pred_fallthru
        _
      %p338 = scmp.lt.s32.totalorder %s16, 12
      // Predicated region
      $region45: #{mccnet_forward.1} parent=5 // pred_check
        %p339 = pneg %p338
      $region46: #{mccnet_forward.1} parent=5 // pred_check_branch
        %341 = sbr.rel (%p339) target = $region48
      $region47: #{mccnet_forward.1} parent=5 // pred_region
        // Predicated region
        $region49: #{mccnet_forward.1} parent=47 // pred_check
          %p342 = pneg %p61
        $region50: #{mccnet_forward.1} parent=47 // pred_check_branch
          %344 = sbr.rel (%p342) target = $region52
        $region51: #{mccnet_forward.1} parent=47 // pred_region
          %s345 = sand.u32 %s51, 1
          %s346 = sand.u32 %s51, 1
          %s347 = smul.addr %s346, 32
          %s348 = scalar_lea.vmem [#allocation10], %s347
          %p349 = scmp.eq.s32.totalorder %s24, 1
          %s350 = scalar_select %p349, 0, %s25
          %s351 = smul.addr %s23, 8
          %s352 = sadd.s32 %s350, %s351
          %s353 = smul.addr %s352, 8
          %s354 = scalar_lea.vmem %s0, %s353
          // Predicated region
          $region53: #{mccnet_forward.1} parent=51 // pred_check
            _
          $region54: #{mccnet_forward.1} parent=51 // pred_check_branch
            %356 = sbr.rel (0) target = $region56
          $region55: #{mccnet_forward.1} parent=51 // pred_region
            // Predicated region
            $region57: #{mccnet_forward.1} parent=55 // pred_check
              _
            $region58: #{mccnet_forward.1} parent=55 // pred_check_branch
              %358 = sbr.rel (0) target = $region60
            $region59: #{mccnet_forward.1} parent=55 // pred_region
              // Predicated region
              $region72: #{mccnet_forward.1} parent=59 // pred_check
                _
              $region73: #{mccnet_forward.1} parent=59 // pred_check_branch
                %380 = sbr.rel (0) target = $region75
              $region74: #{mccnet_forward.1} parent=59 // pred_region
                loop: start=0, step=1, limit=1
                $region76: #{mccnet_forward.1} parent=74 // loop_pre_header
                  _
                $region77: #{mccnet_forward.1} parent=74 // loop_header
                  %s382 = sphi 0, %s386
                  %p383 = scmp.ge.s32.totalorder %s382, 1
                  %s387 = sphi %s354, %s354
                  %s388 = sphi %s348, %s348
                $region78: #{mccnet_forward.1} parent=74 // loop_header_branch
                  %385 = sbr.rel (%p383) target = $region82
                $region79: #{mccnet_forward.1} parent=74 // loop_body
                  %v389 = vld [vmem:[%s387] sm:$0xff]
                  %390 = vst [vmem:[%s388] sm:$0xff] %v389
                  %v391 = vld [vmem:[%s387 + $0x10] sm:$0xff]
                  %392 = vst [vmem:[%s388 + $0x8] sm:$0xff] %v391
                  %v393 = vld [vmem:[%s387 + $0x20] sm:$0xff]
                  %394 = vst [vmem:[%s388 + $0x10] sm:$0xff] %v393
                  %v395 = vld [vmem:[%s387 + $0x30] sm:$0xff]
                  %396 = vst [vmem:[%s388 + $0x18] sm:$0xff] %v395
                $region80: #{mccnet_forward.1} parent=74 // loop_footer
                  %s386 = sadd.s32 1, %s382
                $region81: #{mccnet_forward.1} parent=74 // loop_footer_branch
                  %381 = sbr.rel target = $region77
                $region82: #{mccnet_forward.1} parent=74 // loop_exit
                  _
              $region75: #{mccnet_forward.1} parent=59 // pred_fallthru
                _
              // Predicated region
              $region83: #{mccnet_forward.1} parent=59 // pred_check
                _
              $region84: #{mccnet_forward.1} parent=59 // pred_check_branch
                %398 = sbr.rel target = $region86
              $region85: #{mccnet_forward.1} parent=59 // pred_region
                _
              $region86: #{mccnet_forward.1} parent=59 // pred_fallthru
                _
            $region60: #{mccnet_forward.1} parent=55 // pred_fallthru
              _
            // Predicated region
            $region61: #{mccnet_forward.1} parent=55 // pred_check
              _
            $region62: #{mccnet_forward.1} parent=55 // pred_check_branch
              %360 = sbr.rel target = $region64
            $region63: #{mccnet_forward.1} parent=55 // pred_region
              %s362 = ssub.s32 256, 1
              loop: start=0, step=1, limit=1
              $region65: #{mccnet_forward.1} parent=63 // loop_pre_header
                _
              $region66: #{mccnet_forward.1} parent=63 // loop_header
                %s364 = sphi 0, %s368
                %p365 = scmp.ge.s32.totalorder %s364, 1
                %s369 = sphi %s354, %s354
                %s370 = sphi %s348, %s348
              $region67: #{mccnet_forward.1} parent=63 // loop_header_branch
                %367 = sbr.rel (%p365) target = $region71
              $region68: #{mccnet_forward.1} parent=63 // loop_body
                %v371 = vld [vmem:[%s369] sm:%s362]
                %372 = vst [vmem:[%s370] sm:%s362] %v371
                %v373 = vld [vmem:[%s369 + $0x10] sm:%s362]
                %374 = vst [vmem:[%s370 + $0x8] sm:%s362] %v373
                %v375 = vld [vmem:[%s369 + $0x20] sm:%s362]
                %376 = vst [vmem:[%s370 + $0x10] sm:%s362] %v375
                %v377 = vld [vmem:[%s369 + $0x30] sm:%s362]
                %378 = vst [vmem:[%s370 + $0x18] sm:%s362] %v377
              $region69: #{mccnet_forward.1} parent=63 // loop_footer
                %s368 = sadd.s32 1, %s364
              $region70: #{mccnet_forward.1} parent=63 // loop_footer_branch
                %363 = sbr.rel target = $region66
              $region71: #{mccnet_forward.1} parent=63 // loop_exit
                _
            $region64: #{mccnet_forward.1} parent=55 // pred_fallthru
              _
          $region56: #{mccnet_forward.1} parent=51 // pred_fallthru
            _
          %399 = vnop
        $region52: #{mccnet_forward.1} parent=47 // pred_fallthru
          _
        // Predicated region
        $region87: #{mccnet_forward.1} parent=47 // pred_check
          %p400 = pneg %p93
        $region88: #{mccnet_forward.1} parent=47 // pred_check_branch
          %402 = sbr.rel (%p400) target = $region90
        $region89: #{mccnet_forward.1} parent=47 // pred_region
          %s403 = sand.u32 %s83, 1
          %s404 = sand.u32 %s83, 1
          %s405 = smul.addr %s404, 32
          %s406 = scalar_lea.vmem [#allocation11], %s405
          %p407 = scmp.eq.s32.totalorder %s24, 2
          %s408 = scalar_select %p407, 0, %s25
          %s409 = smul.addr %s23, 8
          %s410 = sadd.s32 %s408, %s409
          %s411 = smul.addr %s410, 8
          %s412 = scalar_lea.vmem %s1, %s411
          // Predicated region
          $region91: #{mccnet_forward.1} parent=89 // pred_check
            _
          $region92: #{mccnet_forward.1} parent=89 // pred_check_branch
            %414 = sbr.rel (0) target = $region94
          $region93: #{mccnet_forward.1} parent=89 // pred_region
            // Predicated region
            $region95: #{mccnet_forward.1} parent=93 // pred_check
              _
            $region96: #{mccnet_forward.1} parent=93 // pred_check_branch
              %416 = sbr.rel (0) target = $region98
            $region97: #{mccnet_forward.1} parent=93 // pred_region
              // Predicated region
              $region110: #{mccnet_forward.1} parent=97 // pred_check
                _
              $region111: #{mccnet_forward.1} parent=97 // pred_check_branch
                %438 = sbr.rel (0) target = $region113
              $region112: #{mccnet_forward.1} parent=97 // pred_region
                loop: start=0, step=1, limit=1
                $region114: #{mccnet_forward.1} parent=112 // loop_pre_header
                  _
                $region115: #{mccnet_forward.1} parent=112 // loop_header
                  %s440 = sphi 0, %s444
                  %p441 = scmp.ge.s32.totalorder %s440, 1
                  %s445 = sphi %s412, %s412
                  %s446 = sphi %s406, %s406
                $region116: #{mccnet_forward.1} parent=112 // loop_header_branch
                  %443 = sbr.rel (%p441) target = $region120
                $region117: #{mccnet_forward.1} parent=112 // loop_body
                  %v447 = vld [vmem:[%s445] sm:$0xff]
                  %448 = vst [vmem:[%s446] sm:$0xff] %v447
                  %v449 = vld [vmem:[%s445 + $0x10] sm:$0xff]
                  %450 = vst [vmem:[%s446 + $0x8] sm:$0xff] %v449
                  %v451 = vld [vmem:[%s445 + $0x20] sm:$0xff]
                  %452 = vst [vmem:[%s446 + $0x10] sm:$0xff] %v451
                  %v453 = vld [vmem:[%s445 + $0x30] sm:$0xff]
                  %454 = vst [vmem:[%s446 + $0x18] sm:$0xff] %v453
                $region118: #{mccnet_forward.1} parent=112 // loop_footer
                  %s444 = sadd.s32 1, %s440
                $region119: #{mccnet_forward.1} parent=112 // loop_footer_branch
                  %439 = sbr.rel target = $region115
                $region120: #{mccnet_forward.1} parent=112 // loop_exit
                  _
              $region113: #{mccnet_forward.1} parent=97 // pred_fallthru
                _
              // Predicated region
              $region121: #{mccnet_forward.1} parent=97 // pred_check
                _
              $region122: #{mccnet_forward.1} parent=97 // pred_check_branch
                %456 = sbr.rel target = $region124
              $region123: #{mccnet_forward.1} parent=97 // pred_region
                _
              $region124: #{mccnet_forward.1} parent=97 // pred_fallthru
                _
            $region98: #{mccnet_forward.1} parent=93 // pred_fallthru
              _
            // Predicated region
            $region99: #{mccnet_forward.1} parent=93 // pred_check
              _
            $region100: #{mccnet_forward.1} parent=93 // pred_check_branch
              %418 = sbr.rel target = $region102
            $region101: #{mccnet_forward.1} parent=93 // pred_region
              %s420 = ssub.s32 256, 1
              loop: start=0, step=1, limit=1
              $region103: #{mccnet_forward.1} parent=101 // loop_pre_header
                _
              $region104: #{mccnet_forward.1} parent=101 // loop_header
                %s422 = sphi 0, %s426
                %p423 = scmp.ge.s32.totalorder %s422, 1
                %s427 = sphi %s412, %s412
                %s428 = sphi %s406, %s406
              $region105: #{mccnet_forward.1} parent=101 // loop_header_branch
                %425 = sbr.rel (%p423) target = $region109
              $region106: #{mccnet_forward.1} parent=101 // loop_body
                %v429 = vld [vmem:[%s427] sm:%s420]
                %430 = vst [vmem:[%s428] sm:%s420] %v429
                %v431 = vld [vmem:[%s427 + $0x10] sm:%s420]
                %432 = vst [vmem:[%s428 + $0x8] sm:%s420] %v431
                %v433 = vld [vmem:[%s427 + $0x20] sm:%s420]
                %434 = vst [vmem:[%s428 + $0x10] sm:%s420] %v433
                %v435 = vld [vmem:[%s427 + $0x30] sm:%s420]
                %436 = vst [vmem:[%s428 + $0x18] sm:%s420] %v435
              $region107: #{mccnet_forward.1} parent=101 // loop_footer
                %s426 = sadd.s32 1, %s422
              $region108: #{mccnet_forward.1} parent=101 // loop_footer_branch
                %421 = sbr.rel target = $region104
              $region109: #{mccnet_forward.1} parent=101 // loop_exit
                _
            $region102: #{mccnet_forward.1} parent=93 // pred_fallthru
              _
          $region94: #{mccnet_forward.1} parent=89 // pred_fallthru
            _
          %457 = vnop
        $region90: #{mccnet_forward.1} parent=47 // pred_fallthru
          _
      $region48: #{mccnet_forward.1} parent=5 // pred_fallthru
        _
      %p458 = scmp.le.s32.totalorder 1, %s16
      %p459 = scmp.lt.s32.totalorder %s16, 13
      %p460 = pnand %p458, %p459
      %p461 = pneg %p460
      // Predicated region
      $region125: #{mccnet_forward.1} parent=5 // pred_check
        _
      $region126: #{mccnet_forward.1} parent=5 // pred_check_branch
        %463 = sbr.rel (%p460) target = $region128
      $region127: #{mccnet_forward.1} parent=5 // pred_region
        %s464 = ssub.s32 %s16, 1
        %s465 = sand.u32 %s54, 1
        %s466 = sand.u32 %s54, 1
        %s467 = smul.addr %s466, 32
        %s468 = scalar_lea.vmem [#allocation10], %s467
        // Predicated region
        $region129: #{mccnet_forward.1} parent=127 // pred_check
          %p469 = pneg %p67
        $region130: #{mccnet_forward.1} parent=127 // pred_check_branch
          %471 = sbr.rel (%p469) target = $region132
        $region131: #{mccnet_forward.1} parent=127 // pred_region
          _
        $region132: #{mccnet_forward.1} parent=127 // pred_fallthru
          _
        %s472 = sand.u32 %s86, 1
        %s473 = sand.u32 %s86, 1
        %s474 = smul.addr %s473, 32
        %s475 = scalar_lea.vmem [#allocation11], %s474
        // Predicated region
        $region133: #{mccnet_forward.1} parent=127 // pred_check
          %p476 = pneg %p99
        $region134: #{mccnet_forward.1} parent=127 // pred_check_branch
          %478 = sbr.rel (%p476) target = $region136
        $region135: #{mccnet_forward.1} parent=127 // pred_region
          _
        $region136: #{mccnet_forward.1} parent=127 // pred_fallthru
          _
        %s479 = sand.u32 %s54, 1
        %s480 = sand.u32 %s54, 1
        %s481 = smul.addr %s480, 32
        %s482 = scalar_lea.vmem [#allocation10], %s481
        %p483 = pneg %p67
        %p484 = pneg %p64
        %s485 = sand.u32 %s86, 1
        %s486 = sand.u32 %s86, 1
        %s487 = smul.addr %s486, 32
        %s488 = scalar_lea.vmem [#allocation11], %s487
        %p489 = pneg %p99
        %p490 = pneg %p96
        %p491 = pneg %p120
        %p492 = pneg %p117
        %p493 = pneg %p141
        %p494 = pneg %p138
        %p495 = pneg %p162
        %p496 = pneg %p159
        %p497 = pneg %p183
        %p498 = pneg %p180
        %p499 = pneg %p204
        %p500 = pneg %p201
        %p501 = pneg %p225
        %p502 = pneg %p222
        %p503 = pneg %p246
        %p504 = pneg %p243
        %p505 = pneg %p267
        %p506 = pneg %p264
        %p507 = pneg %p299
        %p508 = pneg %p296
        %s509 = sand.u32 %s286, 1
        %s510 = sand.u32 %s286, 1
        %s511 = smul.addr %s510, 32
        %s512 = scalar_lea.vmem [#allocation12], %s511
        %p513 = scmp.eq.s32.totalorder %s27, 1
        %s514 = scalar_select %p513, 0, %s28
        %p515 = scmp.eq.s32.totalorder %s27, 2
        %s516 = scalar_select %p515, 0, %s28
        %p517 = scmp.eq.s32.totalorder %s27, 2
        %s518 = scalar_select %p517, %s28, 0
        %p519 = scmp.eq.s32.totalorder %s27, 0
        // Predicated region
        $region137: #{mccnet_forward.1} parent=127 // pred_check
          %p520 = pneg %p519
        $region138: #{mccnet_forward.1} parent=127 // pred_check_branch
          %522 = sbr.rel (%p520) target = $region140
        $region139: #{mccnet_forward.1} parent=127 // pred_region
          %p523 = scmp.eq.s32.totalorder %s28, 0
          // Predicated region
          $region141: #{mccnet_forward.1} parent=139 // pred_check
            %p524 = pneg %p523
          $region142: #{mccnet_forward.1} parent=139 // pred_check_branch
            %526 = sbr.rel (%p524) target = $region144
          $region143: #{mccnet_forward.1} parent=139 // pred_region
            %vm527 = vcmask 7168
            %528 = vst.msk [vmem:[#allocation2] sm:$0xff] %vm527, 0.0
            %529 = vst.msk [vmem:[#allocation2 + $0x8] sm:$0xff] %vm527, 0.0
            %530 = vst.msk [vmem:[#allocation2 + $0x10] sm:$0xff] %vm527, 0.0
            %531 = vst.msk [vmem:[#allocation2 + $0x18] sm:$0xff] %vm527, 0.0
            %532 = vst.msk [vmem:[#allocation3] sm:$0xff] %vm527, 0.0
            %533 = vst.msk [vmem:[#allocation3 + $0x8] sm:$0xff] %vm527, 0.0
            %534 = vst.msk [vmem:[#allocation3 + $0x10] sm:$0xff] %vm527, 0.0
            %535 = vst.msk [vmem:[#allocation3 + $0x18] sm:$0xff] %vm527, 0.0
            %536 = vst.msk [vmem:[#allocation4] sm:$0xff] %vm527, 0.0
            %537 = vst.msk [vmem:[#allocation4 + $0x8] sm:$0xff] %vm527, 0.0
            %538 = vst.msk [vmem:[#allocation4 + $0x10] sm:$0xff] %vm527, 0.0
            %539 = vst.msk [vmem:[#allocation4 + $0x18] sm:$0xff] %vm527, 0.0
            %540 = vst.msk [vmem:[#allocation5] sm:$0xff] %vm527, 0.0
            %541 = vst.msk [vmem:[#allocation5 + $0x8] sm:$0xff] %vm527, 0.0
            %542 = vst.msk [vmem:[#allocation5 + $0x10] sm:$0xff] %vm527, 0.0
            %543 = vst.msk [vmem:[#allocation5 + $0x18] sm:$0xff] %vm527, 0.0
            %544 = vst.msk [vmem:[#allocation6] sm:$0xff] %vm527, 0.0
            %545 = vst.msk [vmem:[#allocation6 + $0x8] sm:$0xff] %vm527, 0.0
            %546 = vst.msk [vmem:[#allocation6 + $0x10] sm:$0xff] %vm527, 0.0
            %547 = vst.msk [vmem:[#allocation6 + $0x18] sm:$0xff] %vm527, 0.0
            %548 = vst.msk [vmem:[#allocation7] sm:$0xff] %vm527, 0.0
            %549 = vst.msk [vmem:[#allocation7 + $0x8] sm:$0xff] %vm527, 0.0
            %550 = vst.msk [vmem:[#allocation7 + $0x10] sm:$0xff] %vm527, 0.0
            %551 = vst.msk [vmem:[#allocation7 + $0x18] sm:$0xff] %vm527, 0.0
          $region144: #{mccnet_forward.1} parent=139 // pred_fallthru
            _
          %v552 = vld [vmem:[%s468] sm:$0xff]
          %v553 = vld [vmem:[%s468 + $0x8] sm:$0xff]
          %v554 = vld [vmem:[%s468 + $0x10] sm:$0xff]
          %v555 = vld [vmem:[%s468 + $0x18] sm:$0xff]
          %v556 = vld [vmem:[%s475] sm:$0xff]
          %v557 = vld [vmem:[%s475 + $0x8] sm:$0xff]
          %v558 = vld [vmem:[%s475 + $0x10] sm:$0xff]
          %v559 = vld [vmem:[%s475 + $0x18] sm:$0xff]
          %v560 = vld [vmem:[#allocation2] sm:$0xff]
          %v561 = vld [vmem:[#allocation2 + $0x8] sm:$0xff]
          %v562 = vld [vmem:[#allocation2 + $0x10] sm:$0xff]
          %v563 = vld [vmem:[#allocation2 + $0x18] sm:$0xff]
          %564 = vadd.xlane.f32.xlu0 %v552
          %v565 = vpop.xlane.xlu0 %564
          %566 = vadd.xlane.f32.xlu0 %v553
          %v567 = vpop.xlane.xlu0 %566
          %568 = vadd.xlane.f32.xlu0 %v554
          %v569 = vpop.xlane.xlu0 %568
          %570 = vadd.xlane.f32.xlu0 %v555
          %v571 = vpop.xlane.xlu0 %570
          %v572 = vadd.f32 %v560, %v565
          %v573 = vadd.f32 %v561, %v567
          %v574 = vadd.f32 %v562, %v569
          %v575 = vadd.f32 %v563, %v571
          %vm576 = vcmask 7168
          %577 = vst.msk [vmem:[#allocation2] sm:$0xff] %vm576, %v572
          %578 = vst.msk [vmem:[#allocation2 + $0x8] sm:$0xff] %vm576, %v573
          %579 = vst.msk [vmem:[#allocation2 + $0x10] sm:$0xff] %vm576, %v574
          %580 = vst.msk [vmem:[#allocation2 + $0x18] sm:$0xff] %vm576, %v575
          %v581 = vld [vmem:[#allocation3] sm:$0xff]
          %v582 = vld [vmem:[#allocation3 + $0x8] sm:$0xff]
          %v583 = vld [vmem:[#allocation3 + $0x10] sm:$0xff]
          %v584 = vld [vmem:[#allocation3 + $0x18] sm:$0xff]
          %v585 = vmul.f32 %v552, %v552
          %v586 = vmul.f32 %v553, %v553
          %v587 = vmul.f32 %v554, %v554
          %v588 = vmul.f32 %v555, %v555
          %589 = vadd.xlane.f32.xlu0 %v585
          %v590 = vpop.xlane.xlu0 %589
          %591 = vadd.xlane.f32.xlu0 %v586
          %v592 = vpop.xlane.xlu0 %591
          %593 = vadd.xlane.f32.xlu0 %v587
          %v594 = vpop.xlane.xlu0 %593
          %595 = vadd.xlane.f32.xlu0 %v588
          %v596 = vpop.xlane.xlu0 %595
          %v597 = vadd.f32 %v581, %v590
          %v598 = vadd.f32 %v582, %v592
          %v599 = vadd.f32 %v583, %v594
          %v600 = vadd.f32 %v584, %v596
          %601 = vst.msk [vmem:[#allocation3] sm:$0xff] %vm576, %v597
          %602 = vst.msk [vmem:[#allocation3 + $0x8] sm:$0xff] %vm576, %v598
          %603 = vst.msk [vmem:[#allocation3 + $0x10] sm:$0xff] %vm576, %v599
          %604 = vst.msk [vmem:[#allocation3 + $0x18] sm:$0xff] %vm576, %v600
          %v605 = vld [vmem:[#allocation4] sm:$0xff]
          %v606 = vld [vmem:[#allocation4 + $0x8] sm:$0xff]
          %v607 = vld [vmem:[#allocation4 + $0x10] sm:$0xff]
          %v608 = vld [vmem:[#allocation4 + $0x18] sm:$0xff]
          %609 = vadd.xlane.f32.xlu0 %v556
          %v610 = vpop.xlane.xlu0 %609
          %611 = vadd.xlane.f32.xlu0 %v557
          %v612 = vpop.xlane.xlu0 %611
          %613 = vadd.xlane.f32.xlu0 %v558
          %v614 = vpop.xlane.xlu0 %613
          %615 = vadd.xlane.f32.xlu0 %v559
          %v616 = vpop.xlane.xlu0 %615
          %v617 = vadd.f32 %v605, %v610
          %v618 = vadd.f32 %v606, %v612
          %v619 = vadd.f32 %v607, %v614
          %v620 = vadd.f32 %v608, %v616
          %621 = vst.msk [vmem:[#allocation4] sm:$0xff] %vm576, %v617
          %622 = vst.msk [vmem:[#allocation4 + $0x8] sm:$0xff] %vm576, %v618
          %623 = vst.msk [vmem:[#allocation4 + $0x10] sm:$0xff] %vm576, %v619
          %624 = vst.msk [vmem:[#allocation4 + $0x18] sm:$0xff] %vm576, %v620
          %v625 = vld [vmem:[#allocation5] sm:$0xff]
          %v626 = vld [vmem:[#allocation5 + $0x8] sm:$0xff]
          %v627 = vld [vmem:[#allocation5 + $0x10] sm:$0xff]
          %v628 = vld [vmem:[#allocation5 + $0x18] sm:$0xff]
          %v629 = vmul.f32 %v556, %v556
          %v630 = vmul.f32 %v557, %v557
          %v631 = vmul.f32 %v558, %v558
          %v632 = vmul.f32 %v559, %v559
          %633 = vadd.xlane.f32.xlu0 %v629
          %v634 = vpop.xlane.xlu0 %633
          %635 = vadd.xlane.f32.xlu0 %v630
          %v636 = vpop.xlane.xlu0 %635
          %637 = vadd.xlane.f32.xlu0 %v631
          %v638 = vpop.xlane.xlu0 %637
          %639 = vadd.xlane.f32.xlu0 %v632
          %v640 = vpop.xlane.xlu0 %639
          %v641 = vadd.f32 %v625, %v634
          %v642 = vadd.f32 %v626, %v636
          %v643 = vadd.f32 %v627, %v638
          %v644 = vadd.f32 %v628, %v640
          %645 = vst.msk [vmem:[#allocation5] sm:$0xff] %vm576, %v641
          %646 = vst.msk [vmem:[#allocation5 + $0x8] sm:$0xff] %vm576, %v642
          %647 = vst.msk [vmem:[#allocation5 + $0x10] sm:$0xff] %vm576, %v643
          %648 = vst.msk [vmem:[#allocation5 + $0x18] sm:$0xff] %vm576, %v644
        $region140: #{mccnet_forward.1} parent=127 // pred_fallthru
          _
        %p649 = scmp.eq.s32.totalorder %s27, 1
        // Predicated region
        $region145: #{mccnet_forward.1} parent=127 // pred_check
          %p650 = pneg %p649
        $region146: #{mccnet_forward.1} parent=127 // pred_check_branch
          %652 = sbr.rel (%p650) target = $region148
        $region147: #{mccnet_forward.1} parent=127 // pred_region
          %v653 = vld [vmem:[#allocation4] sm:$0xff]
          %v654 = vld [vmem:[#allocation4 + $0x8] sm:$0xff]
          %v655 = vld [vmem:[#allocation4 + $0x10] sm:$0xff]
          %v656 = vld [vmem:[#allocation4 + $0x18] sm:$0xff]
          %v657 = vld [vmem:[#allocation5] sm:$0xff]
          %v658 = vld [vmem:[#allocation5 + $0x8] sm:$0xff]
          %v659 = vld [vmem:[#allocation5 + $0x10] sm:$0xff]
          %v660 = vld [vmem:[#allocation5 + $0x18] sm:$0xff]
          %v661 = vmul.f32 %v653, 0.00390625
          %v662 = vmul.f32 %v654, 0.00390625
          %v663 = vmul.f32 %v655, 0.00390625
          %v664 = vmul.f32 %v656, 0.00390625
          %v665 = vmul.f32 %v653, %v661
          %v666 = vmul.f32 %v654, %v662
          %v667 = vmul.f32 %v655, %v663
          %v668 = vmul.f32 %v656, %v664
          %v669 = vsub.f32 %v657, %v665
          %v670 = vsub.f32 %v658, %v666
          %v671 = vsub.f32 %v659, %v667
          %v672 = vsub.f32 %v660, %v668
          %v673 = vmul.f32 %v669, 0.003921569
          %v674 = vmul.f32 %v670, 0.003921569
          %v675 = vmul.f32 %v671, 0.003921569
          %v676 = vmul.f32 %v672, 0.003921569
          %v677 = vmax.f32 %v673, 0.0
          %v678 = vmax.f32 %v674, 0.0
          %v679 = vmax.f32 %v675, 0.0
          %v680 = vmax.f32 %v676, 0.0
          %v681 = vadd.f32 %v677, 1e-05
          %v682 = vadd.f32 %v678, 1e-05
          %v683 = vadd.f32 %v679, 1e-05
          %v684 = vadd.f32 %v680, 1e-05
          %v685 = vrsqrt.pop %v681
          %v686 = vmul.f32 %v685, %v681
          %v687 = vmul.f32 %v686, %v685
          %v688 = vmul.f32 0.5, %v687
          %v689 = vsub.f32 1.5, %v688
          %v690 = vmul.f32 %v685, %v689
          %vm691 = vweird.f32 %v681
          %vm692 = vweird.f32 %v685
          %vm693 = vmor %vm691, %vm692
          %v694 = vsel %vm693, %v685, %v690
          %v695 = vrsqrt.pop %v682
          %v696 = vmul.f32 %v695, %v682
          %v697 = vmul.f32 %v696, %v695
          %v698 = vmul.f32 0.5, %v697
          %v699 = vsub.f32 1.5, %v698
          %v700 = vmul.f32 %v695, %v699
          %vm701 = vweird.f32 %v682
          %vm702 = vweird.f32 %v695
          %vm703 = vmor %vm701, %vm702
          %v704 = vsel %vm703, %v695, %v700
          %v705 = vrsqrt.pop %v683
          %v706 = vmul.f32 %v705, %v683
          %v707 = vmul.f32 %v706, %v705
          %v708 = vmul.f32 0.5, %v707
          %v709 = vsub.f32 1.5, %v708
          %v710 = vmul.f32 %v705, %v709
          %vm711 = vweird.f32 %v683
          %vm712 = vweird.f32 %v705
          %vm713 = vmor %vm711, %vm712
          %v714 = vsel %vm713, %v705, %v710
          %v715 = vrsqrt.pop %v684
          %v716 = vmul.f32 %v715, %v684
          %v717 = vmul.f32 %v716, %v715
          %v718 = vmul.f32 0.5, %v717
          %v719 = vsub.f32 1.5, %v718
          %v720 = vmul.f32 %v715, %v719
          %vm721 = vweird.f32 %v684
          %vm722 = vweird.f32 %v715
          %vm723 = vmor %vm721, %vm722
          %v724 = vsel %vm723, %v715, %v720
          %v725 = vld [vmem:[%s475] sm:$0xff]
          %v726 = vld [vmem:[%s475 + $0x8] sm:$0xff]
          %v727 = vld [vmem:[%s475 + $0x10] sm:$0xff]
          %v728 = vld [vmem:[%s475 + $0x18] sm:$0xff]
          %730 = vset.pattern.permute.xlu0 0
          %731 = vperm.xlu0 %730, %v661
          %v732 = vpop.permute.xlu0 %731
          %735 = vset.pattern.permute.xlu0 0
          %736 = vperm.xlu0 %735, %v662
          %v737 = vpop.permute.xlu0 %736
          %740 = vset.pattern.permute.xlu0 0
          %741 = vperm.xlu0 %740, %v663
          %v742 = vpop.permute.xlu0 %741
          %745 = vset.pattern.permute.xlu0 0
          %746 = vperm.xlu0 %745, %v664
          %v747 = vpop.permute.xlu0 %746
          %v749 = vsub.f32 %v725, %v732
          %v750 = vsub.f32 %v726, %v737
          %v751 = vsub.f32 %v727, %v742
          %v752 = vsub.f32 %v728, %v747
          %754 = vset.pattern.permute.xlu0 0
          %755 = vperm.xlu0 %754, %v694
          %v756 = vpop.permute.xlu0 %755
          %759 = vset.pattern.permute.xlu0 0
          %760 = vperm.xlu0 %759, %v704
          %v761 = vpop.permute.xlu0 %760
          %764 = vset.pattern.permute.xlu0 0
          %765 = vperm.xlu0 %764, %v714
          %v766 = vpop.permute.xlu0 %765
          %769 = vset.pattern.permute.xlu0 0
          %770 = vperm.xlu0 %769, %v724
          %v771 = vpop.permute.xlu0 %770
          %v773 = vmul.f32 %v749, %v756
          %v774 = vmul.f32 %v750, %v761
          %v775 = vmul.f32 %v751, %v766
          %v776 = vmul.f32 %v752, %v771
          %v777 = vld [vmem:[%s4] sm:$0xff]
          %v778 = vld [vmem:[%s4 + $0x8] sm:$0xff]
          %v779 = vld [vmem:[%s4 + $0x10] sm:$0xff]
          %v780 = vld [vmem:[%s4 + $0x18] sm:$0xff]
          %v781 = vld [vmem:[%s5] sm:$0xff]
          %v782 = vld [vmem:[%s5 + $0x8] sm:$0xff]
          %v783 = vld [vmem:[%s5 + $0x10] sm:$0xff]
          %v784 = vld [vmem:[%s5 + $0x18] sm:$0xff]
          %786 = vset.pattern.permute.xlu0 0
          %787 = vperm.xlu0 %786, %v781
          %v788 = vpop.permute.xlu0 %787
          %791 = vset.pattern.permute.xlu0 0
          %792 = vperm.xlu0 %791, %v782
          %v793 = vpop.permute.xlu0 %792
          %796 = vset.pattern.permute.xlu0 0
          %797 = vperm.xlu0 %796, %v783
          %v798 = vpop.permute.xlu0 %797
          %801 = vset.pattern.permute.xlu0 0
          %802 = vperm.xlu0 %801, %v784
          %v803 = vpop.permute.xlu0 %802
          %vm805 = vcmask 261120
          %v807 = vsel %vm805, %v777, 0
          %v810 = vsel %vm805, %v778, 0
          %v813 = vsel %vm805, %v779, 0
          %v816 = vsel %vm805, %v780, 0
          %818 = vmatpush.msra.mxu0 0.0
          %819 = vmatpush.msra.mxu0 0.0
          %820 = vmatpush.msra.mxu0 0.0
          %821 = vmatpush.msra.mxu0 0.0
          %822 = vmatpush.msra.mxu0 0.0
          %823 = vmatpush.msra.mxu0 0.0
          %824 = vmatpush.msra.mxu0 0.0
          %825 = vmatpush.msra.mxu0 0.0
          %826 = vmatpush.msra.mxu0 0.0
          %827 = vmatpush.msra.mxu0 0.0
          %828 = vmatpush.msra.mxu0 0.0
          %829 = vmatpush.msra.mxu0 0.0
          %830 = vmatpush.msra.mxu0 %v776
          %831 = vmatpush.msra.mxu0 %v775
          %832 = vmatpush.msra.mxu0 %v774
          %833 = vmatpush.msra.mxu0 %v773
          %834 = vmatmul.f32.gmra.mxu0 %v807
          %v835 = vpop.f32.mrf.mxu0
          %v836 = vadd.f32 %v788, %v835
          %837 = vmatmul.f32.gmra.mxu0 %v810
          %v838 = vpop.f32.mrf.mxu0
          %v839 = vadd.f32 %v793, %v838
          %840 = vmatmul.f32.gmra.mxu0 %v813
          %v841 = vpop.f32.mrf.mxu0
          %v842 = vadd.f32 %v798, %v841
          %843 = vmatmul.f32.gmra.mxu0 %v816
          %v844 = vpop.f32.mrf.mxu0
          %v845 = vadd.f32 %v803, %v844
          %846 = vdwg.mxu0
          %v847 = vld [vmem:[#allocation6] sm:$0xff]
          %v848 = vld [vmem:[#allocation6 + $0x8] sm:$0xff]
          %v849 = vld [vmem:[#allocation6 + $0x10] sm:$0xff]
          %v850 = vld [vmem:[#allocation6 + $0x18] sm:$0xff]
          %851 = vadd.xlane.f32.xlu0 %v836
          %v852 = vpop.xlane.xlu0 %851
          %853 = vadd.xlane.f32.xlu0 %v839
          %v854 = vpop.xlane.xlu0 %853
          %855 = vadd.xlane.f32.xlu0 %v842
          %v856 = vpop.xlane.xlu0 %855
          %857 = vadd.xlane.f32.xlu0 %v845
          %v858 = vpop.xlane.xlu0 %857
          %v859 = vadd.f32 %v847, %v852
          %v860 = vadd.f32 %v848, %v854
          %v861 = vadd.f32 %v849, %v856
          %v862 = vadd.f32 %v850, %v858
          %vm863 = vcmask 7168
          %864 = vst.msk [vmem:[#allocation6] sm:$0xff] %vm863, %v859
          %865 = vst.msk [vmem:[#allocation6 + $0x8] sm:$0xff] %vm863, %v860
          %866 = vst.msk [vmem:[#allocation6 + $0x10] sm:$0xff] %vm863, %v861
          %867 = vst.msk [vmem:[#allocation6 + $0x18] sm:$0xff] %vm863, %v862
          %v868 = vld [vmem:[#allocation7] sm:$0xff]
          %v869 = vld [vmem:[#allocation7 + $0x8] sm:$0xff]
          %v870 = vld [vmem:[#allocation7 + $0x10] sm:$0xff]
          %v871 = vld [vmem:[#allocation7 + $0x18] sm:$0xff]
          %v872 = vmul.f32 %v836, %v836
          %v873 = vmul.f32 %v839, %v839
          %v874 = vmul.f32 %v842, %v842
          %v875 = vmul.f32 %v845, %v845
          %876 = vadd.xlane.f32.xlu0 %v872
          %v877 = vpop.xlane.xlu0 %876
          %878 = vadd.xlane.f32.xlu0 %v873
          %v879 = vpop.xlane.xlu0 %878
          %880 = vadd.xlane.f32.xlu0 %v874
          %v881 = vpop.xlane.xlu0 %880
          %882 = vadd.xlane.f32.xlu0 %v875
          %v883 = vpop.xlane.xlu0 %882
          %v884 = vadd.f32 %v868, %v877
          %v885 = vadd.f32 %v869, %v879
          %v886 = vadd.f32 %v870, %v881
          %v887 = vadd.f32 %v871, %v883
          %888 = vst.msk [vmem:[#allocation7] sm:$0xff] %vm863, %v884
          %889 = vst.msk [vmem:[#allocation7 + $0x8] sm:$0xff] %vm863, %v885
          %890 = vst.msk [vmem:[#allocation7 + $0x10] sm:$0xff] %vm863, %v886
          %891 = vst.msk [vmem:[#allocation7 + $0x18] sm:$0xff] %vm863, %v887
          %p892 = scmp.eq.s32.totalorder %s28, 1
          // Predicated region
          $region149: #{mccnet_forward.1} parent=147 // pred_check
            %p893 = pneg %p892
          $region150: #{mccnet_forward.1} parent=147 // pred_check_branch
            %895 = sbr.rel (%p893) target = $region152
          $region151: #{mccnet_forward.1} parent=147 // pred_region
            %v896 = vld [vmem:[#allocation7] sm:$0xff]
            %v897 = vld [vmem:[#allocation7 + $0x8] sm:$0xff]
            %v898 = vld [vmem:[#allocation7 + $0x10] sm:$0xff]
            %v899 = vld [vmem:[#allocation7 + $0x18] sm:$0xff]
            %v900 = vld [vmem:[#allocation6] sm:$0xff]
            %v901 = vld [vmem:[#allocation6 + $0x8] sm:$0xff]
            %v902 = vld [vmem:[#allocation6 + $0x10] sm:$0xff]
            %v903 = vld [vmem:[#allocation6 + $0x18] sm:$0xff]
            %v904 = vrcp.pop %v900
            %v905 = vmul.f32 %v900, %v904
            %v906 = vsub.f32 1.0, %v905
            %v907 = vmul.f32 %v904, %v906
            %v908 = vadd.f32 %v904, %v907
            %vm909 = vweird.f32 %v900
            %vm910 = vweird.f32 %v904
            %vm911 = vmor %vm909, %vm910
            %v912 = vsel %vm911, %v904, %v908
            %v913 = vand.u32 2147483647, %v900
            %vm914 = vcmp.eq.f32.partialorder %v913, 8.507059e+37
            %v915 = vand.u32 %v900, 2147483648
            %v916 = vor.u32 1.1754944e-38, %v915
            %v917 = vsel %vm914, %v916, %v912
            %v918 = vmul.f32 %v896, %v917
            %v919 = vrcp.pop %v901
            %v920 = vmul.f32 %v901, %v919
            %v921 = vsub.f32 1.0, %v920
            %v922 = vmul.f32 %v919, %v921
            %v923 = vadd.f32 %v919, %v922
            %vm924 = vweird.f32 %v901
            %vm925 = vweird.f32 %v919
            %vm926 = vmor %vm924, %vm925
            %v927 = vsel %vm926, %v919, %v923
            %v928 = vand.u32 2147483647, %v901
            %vm929 = vcmp.eq.f32.partialorder %v928, 8.507059e+37
            %v930 = vand.u32 %v901, 2147483648
            %v931 = vor.u32 1.1754944e-38, %v930
            %v932 = vsel %vm929, %v931, %v927
            %v933 = vmul.f32 %v897, %v932
            %v934 = vrcp.pop %v902
            %v935 = vmul.f32 %v902, %v934
            %v936 = vsub.f32 1.0, %v935
            %v937 = vmul.f32 %v934, %v936
            %v938 = vadd.f32 %v934, %v937
            %vm939 = vweird.f32 %v902
            %vm940 = vweird.f32 %v934
            %vm941 = vmor %vm939, %vm940
            %v942 = vsel %vm941, %v934, %v938
            %v943 = vand.u32 2147483647, %v902
            %vm944 = vcmp.eq.f32.partialorder %v943, 8.507059e+37
            %v945 = vand.u32 %v902, 2147483648
            %v946 = vor.u32 1.1754944e-38, %v945
            %v947 = vsel %vm944, %v946, %v942
            %v948 = vmul.f32 %v898, %v947
            %v949 = vrcp.pop %v903
            %v950 = vmul.f32 %v903, %v949
            %v951 = vsub.f32 1.0, %v950
            %v952 = vmul.f32 %v949, %v951
            %v953 = vadd.f32 %v949, %v952
            %vm954 = vweird.f32 %v903
            %vm955 = vweird.f32 %v949
            %vm956 = vmor %vm954, %vm955
            %v957 = vsel %vm956, %v949, %v953
            %v958 = vand.u32 2147483647, %v903
            %vm959 = vcmp.eq.f32.partialorder %v958, 8.507059e+37
            %v960 = vand.u32 %v903, 2147483648
            %v961 = vor.u32 1.1754944e-38, %v960
            %v962 = vsel %vm959, %v961, %v957
            %v963 = vmul.f32 %v899, %v962
            %v964 = vld [vmem:[%s8] sm:$0xff]
            %v965 = vld [vmem:[%s8 + $0x8] sm:$0xff]
            %v966 = vld [vmem:[%s8 + $0x10] sm:$0xff]
            %v967 = vld [vmem:[%s8 + $0x18] sm:$0xff]
            %v968 = vld [vmem:[%s9] sm:$0xff]
            %v969 = vld [vmem:[%s9 + $0x8] sm:$0xff]
            %v970 = vld [vmem:[%s9 + $0x10] sm:$0xff]
            %v971 = vld [vmem:[%s9 + $0x18] sm:$0xff]
            %v973 = vsel %vm805, %v964, 0
            %v976 = vsel %vm805, %v965, 0
            %v979 = vsel %vm805, %v966, 0
            %v982 = vsel %vm805, %v967, 0
            %984 = vmatpush.msra.mxu0 0.0
            %985 = vmatpush.msra.mxu0 0.0
            %986 = vmatpush.msra.mxu0 0.0
            %987 = vmatpush.msra.mxu0 0.0
            %988 = vmatpush.msra.mxu0 0.0
            %989 = vmatpush.msra.mxu0 0.0
            %990 = vmatpush.msra.mxu0 0.0
            %991 = vmatpush.msra.mxu0 0.0
            %992 = vmatpush.msra.mxu0 0.0
            %993 = vmatpush.msra.mxu0 0.0
            %994 = vmatpush.msra.mxu0 0.0
            %995 = vmatpush.msra.mxu0 0.0
            %996 = vmatpush.msra.mxu0 %v963
            %997 = vmatpush.msra.mxu0 %v948
            %998 = vmatpush.msra.mxu0 %v933
            %999 = vmatpush.msra.mxu0 %v918
            %1000 = vmatmul.f32.gmra.mxu0 %v973
            %v1001 = vpop.f32.mrf.mxu0
            %v1002 = vadd.f32 %v968, %v1001
            %1003 = vmatmul.f32.gmra.mxu0 %v976
            %v1004 = vpop.f32.mrf.mxu0
            %v1005 = vadd.f32 %v969, %v1004
            %1006 = vmatmul.f32.gmra.mxu0 %v979
            %v1007 = vpop.f32.mrf.mxu0
            %v1008 = vadd.f32 %v970, %v1007
            %1009 = vmatmul.f32.gmra.mxu0 %v982
            %v1010 = vpop.f32.mrf.mxu0
            %v1011 = vadd.f32 %v971, %v1010
            %1012 = vdwg.mxu0
            %v1013 = vld [vmem:[%s6] sm:$0xff]
            %v1014 = vld [vmem:[%s6 + $0x8] sm:$0xff]
            %v1015 = vld [vmem:[%s6 + $0x10] sm:$0xff]
            %v1016 = vld [vmem:[%s6 + $0x18] sm:$0xff]
            %v1017 = vld [vmem:[%s2] sm:$0xff]
            %v1018 = vld [vmem:[%s2 + $0x8] sm:$0xff]
            %v1019 = vld [vmem:[%s2 + $0x10] sm:$0xff]
            %v1020 = vld [vmem:[%s2 + $0x18] sm:$0xff]
            %1022 = vset.pattern.permute.xlu0 0
            %1023 = vperm.xlu0 %1022, %v1002
            %v1024 = vpop.permute.xlu0 %1023
            %1027 = vset.pattern.permute.xlu0 0
            %1028 = vperm.xlu0 %1027, %v1005
            %v1029 = vpop.permute.xlu0 %1028
            %1032 = vset.pattern.permute.xlu0 0
            %1033 = vperm.xlu0 %1032, %v1008
            %v1034 = vpop.permute.xlu0 %1033
            %1037 = vset.pattern.permute.xlu0 0
            %1038 = vperm.xlu0 %1037, %v1011
            %v1039 = vpop.permute.xlu0 %1038
            %v1041 = vmul.f32 %v1024, %v1017
            %v1042 = vmul.f32 %v1029, %v1018
            %v1043 = vmul.f32 %v1034, %v1019
            %v1044 = vmul.f32 %v1039, %v1020
            %v1046 = vsel %vm805, %v1013, 0
            %v1049 = vsel %vm805, %v1014, 0
            %v1052 = vsel %vm805, %v1015, 0
            %v1055 = vsel %vm805, %v1016, 0
            %1057 = vmatpush.msra.mxu0 0.0
            %1058 = vmatpush.msra.mxu0 0.0
            %1059 = vmatpush.msra.mxu0 0.0
            %1060 = vmatpush.msra.mxu0 0.0
            %1061 = vmatpush.msra.mxu0 0.0
            %1062 = vmatpush.msra.mxu0 0.0
            %1063 = vmatpush.msra.mxu0 0.0
            %1064 = vmatpush.msra.mxu0 0.0
            %1065 = vmatpush.msra.mxu0 0.0
            %1066 = vmatpush.msra.mxu0 0.0
            %1067 = vmatpush.msra.mxu0 0.0
            %1068 = vmatpush.msra.mxu0 0.0
            %1069 = vmatpush.msra.mxu0 %v1044
            %1070 = vmatpush.msra.mxu0 %v1043
            %1071 = vmatpush.msra.mxu0 %v1042
            %1072 = vmatpush.msra.mxu0 %v1041
            %1073 = vmatmul.f32.gmra.mxu0 %v1046
            %v1074 = vpop.f32.mrf.mxu0
            %v1075 = vadd.f32 0.0, %v1074
            %1076 = vmatmul.f32.gmra.mxu0 %v1049
            %v1077 = vpop.f32.mrf.mxu0
            %v1078 = vadd.f32 0.0, %v1077
            %1079 = vmatmul.f32.gmra.mxu0 %v1052
            %v1080 = vpop.f32.mrf.mxu0
            %v1081 = vadd.f32 0.0, %v1080
            %1082 = vmatmul.f32.gmra.mxu0 %v1055
            %v1083 = vpop.f32.mrf.mxu0
            %v1084 = vadd.f32 0.0, %v1083
            %1085 = vdwg.mxu0
            %1086 = vst.msk [vmem:[#allocation8] sm:$0xff] %vm805, %v1075
            %1087 = vst.msk [vmem:[#allocation8 + $0x8] sm:$0xff] %vm805, %v1078
            %1088 = vst.msk [vmem:[#allocation8 + $0x10] sm:$0xff] %vm805, %v1081
            %1089 = vst.msk [vmem:[#allocation8 + $0x18] sm:$0xff] %vm805, %v1084
            %v1090 = vld [vmem:[%s6] sm:$0xff]
            %v1091 = vld [vmem:[%s6 + $0x8] sm:$0xff]
            %v1092 = vld [vmem:[%s6 + $0x10] sm:$0xff]
            %v1093 = vld [vmem:[%s6 + $0x18] sm:$0xff]
            %v1094 = vld [vmem:[%s3] sm:$0xff]
            %v1095 = vld [vmem:[%s3 + $0x8] sm:$0xff]
            %v1096 = vld [vmem:[%s3 + $0x10] sm:$0xff]
            %v1097 = vld [vmem:[%s3 + $0x18] sm:$0xff]
            %v1098 = vmul.f32 %v1002, %v1094
            %v1099 = vmul.f32 %v1005, %v1095
            %v1100 = vmul.f32 %v1008, %v1096
            %v1101 = vmul.f32 %v1011, %v1097
            %v1102 = vld [vmem:[%s7] sm:$0xff]
            %v1103 = vld [vmem:[%s7 + $0x8] sm:$0xff]
            %v1104 = vld [vmem:[%s7 + $0x10] sm:$0xff]
            %v1105 = vld [vmem:[%s7 + $0x18] sm:$0xff]
            %v1107 = vsel %vm805, %v1090, 0
            %v1110 = vsel %vm805, %v1091, 0
            %v1113 = vsel %vm805, %v1092, 0
            %v1116 = vsel %vm805, %v1093, 0
            %1118 = vmatpush.msra.mxu0 0.0
            %1119 = vmatpush.msra.mxu0 0.0
            %1120 = vmatpush.msra.mxu0 0.0
            %1121 = vmatpush.msra.mxu0 0.0
            %1122 = vmatpush.msra.mxu0 0.0
            %1123 = vmatpush.msra.mxu0 0.0
            %1124 = vmatpush.msra.mxu0 0.0
            %1125 = vmatpush.msra.mxu0 0.0
            %1126 = vmatpush.msra.mxu0 0.0
            %1127 = vmatpush.msra.mxu0 0.0
            %1128 = vmatpush.msra.mxu0 0.0
            %1129 = vmatpush.msra.mxu0 0.0
            %1130 = vmatpush.msra.mxu0 %v1101
            %1131 = vmatpush.msra.mxu0 %v1100
            %1132 = vmatpush.msra.mxu0 %v1099
            %1133 = vmatpush.msra.mxu0 %v1098
            %1134 = vmatmul.f32.gmra.mxu0 %v1107
            %v1135 = vpop.f32.mrf.mxu0
            %v1136 = vadd.f32 %v1102, %v1135
            %1137 = vmatmul.f32.gmra.mxu0 %v1110
            %v1138 = vpop.f32.mrf.mxu0
            %v1139 = vadd.f32 %v1103, %v1138
            %1140 = vmatmul.f32.gmra.mxu0 %v1113
            %v1141 = vpop.f32.mrf.mxu0
            %v1142 = vadd.f32 %v1104, %v1141
            %1143 = vmatmul.f32.gmra.mxu0 %v1116
            %v1144 = vpop.f32.mrf.mxu0
            %v1145 = vadd.f32 %v1105, %v1144
            %1146 = vdwg.mxu0
            %1147 = vst.msk [vmem:[#allocation9] sm:$0xff] %vm863, %v1136
            %1148 = vst.msk [vmem:[#allocation9 + $0x8] sm:$0xff] %vm863, %v1139
            %1149 = vst.msk [vmem:[#allocation9 + $0x10] sm:$0xff] %vm863, %v1142
            %1150 = vst.msk [vmem:[#allocation9 + $0x18] sm:$0xff] %vm863, %v1145
          $region152: #{mccnet_forward.1} parent=147 // pred_fallthru
            _
        $region148: #{mccnet_forward.1} parent=127 // pred_fallthru
          _
        %p1151 = scmp.eq.s32.totalorder %s27, 2
        // Predicated region
        $region153: #{mccnet_forward.1} parent=127 // pred_check
          %p1152 = pneg %p1151
        $region154: #{mccnet_forward.1} parent=127 // pred_check_branch
          %1154 = sbr.rel (%p1152) target = $region156
        $region155: #{mccnet_forward.1} parent=127 // pred_region
          %v1155 = vld [vmem:[#allocation2] sm:$0xff]
          %v1156 = vld [vmem:[#allocation2 + $0x8] sm:$0xff]
          %v1157 = vld [vmem:[#allocation2 + $0x10] sm:$0xff]
          %v1158 = vld [vmem:[#allocation2 + $0x18] sm:$0xff]
          %v1159 = vld [vmem:[#allocation3] sm:$0xff]
          %v1160 = vld [vmem:[#allocation3 + $0x8] sm:$0xff]
          %v1161 = vld [vmem:[#allocation3 + $0x10] sm:$0xff]
          %v1162 = vld [vmem:[#allocation3 + $0x18] sm:$0xff]
          %v1163 = vmul.f32 %v1155, 0.00390625
          %v1164 = vmul.f32 %v1156, 0.00390625
          %v1165 = vmul.f32 %v1157, 0.00390625
          %v1166 = vmul.f32 %v1158, 0.00390625
          %v1167 = vmul.f32 %v1155, %v1163
          %v1168 = vmul.f32 %v1156, %v1164
          %v1169 = vmul.f32 %v1157, %v1165
          %v1170 = vmul.f32 %v1158, %v1166
          %v1171 = vsub.f32 %v1159, %v1167
          %v1172 = vsub.f32 %v1160, %v1168
          %v1173 = vsub.f32 %v1161, %v1169
          %v1174 = vsub.f32 %v1162, %v1170
          %v1175 = vmul.f32 %v1171, 0.003921569
          %v1176 = vmul.f32 %v1172, 0.003921569
          %v1177 = vmul.f32 %v1173, 0.003921569
          %v1178 = vmul.f32 %v1174, 0.003921569
          %v1179 = vmax.f32 %v1175, 0.0
          %v1180 = vmax.f32 %v1176, 0.0
          %v1181 = vmax.f32 %v1177, 0.0
          %v1182 = vmax.f32 %v1178, 0.0
          %v1183 = vadd.f32 %v1179, 1e-05
          %v1184 = vadd.f32 %v1180, 1e-05
          %v1185 = vadd.f32 %v1181, 1e-05
          %v1186 = vadd.f32 %v1182, 1e-05
          %v1187 = vrsqrt.pop %v1183
          %v1188 = vmul.f32 %v1187, %v1183
          %v1189 = vmul.f32 %v1188, %v1187
          %v1190 = vmul.f32 0.5, %v1189
          %v1191 = vsub.f32 1.5, %v1190
          %v1192 = vmul.f32 %v1187, %v1191
          %vm1193 = vweird.f32 %v1183
          %vm1194 = vweird.f32 %v1187
          %vm1195 = vmor %vm1193, %vm1194
          %v1196 = vsel %vm1195, %v1187, %v1192
          %v1197 = vrsqrt.pop %v1184
          %v1198 = vmul.f32 %v1197, %v1184
          %v1199 = vmul.f32 %v1198, %v1197
          %v1200 = vmul.f32 0.5, %v1199
          %v1201 = vsub.f32 1.5, %v1200
          %v1202 = vmul.f32 %v1197, %v1201
          %vm1203 = vweird.f32 %v1184
          %vm1204 = vweird.f32 %v1197
          %vm1205 = vmor %vm1203, %vm1204
          %v1206 = vsel %vm1205, %v1197, %v1202
          %v1207 = vrsqrt.pop %v1185
          %v1208 = vmul.f32 %v1207, %v1185
          %v1209 = vmul.f32 %v1208, %v1207
          %v1210 = vmul.f32 0.5, %v1209
          %v1211 = vsub.f32 1.5, %v1210
          %v1212 = vmul.f32 %v1207, %v1211
          %vm1213 = vweird.f32 %v1185
          %vm1214 = vweird.f32 %v1207
          %vm1215 = vmor %vm1213, %vm1214
          %v1216 = vsel %vm1215, %v1207, %v1212
          %v1217 = vrsqrt.pop %v1186
          %v1218 = vmul.f32 %v1217, %v1186
          %v1219 = vmul.f32 %v1218, %v1217
          %v1220 = vmul.f32 0.5, %v1219
          %v1221 = vsub.f32 1.5, %v1220
          %v1222 = vmul.f32 %v1217, %v1221
          %vm1223 = vweird.f32 %v1186
          %vm1224 = vweird.f32 %v1217
          %vm1225 = vmor %vm1223, %vm1224
          %v1226 = vsel %vm1225, %v1217, %v1222
          %v1227 = vld [vmem:[%s468] sm:$0xff]
          %v1228 = vld [vmem:[%s468 + $0x8] sm:$0xff]
          %v1229 = vld [vmem:[%s468 + $0x10] sm:$0xff]
          %v1230 = vld [vmem:[%s468 + $0x18] sm:$0xff]
          %1232 = vset.pattern.permute.xlu0 0
          %1233 = vperm.xlu0 %1232, %v1163
          %v1234 = vpop.permute.xlu0 %1233
          %1237 = vset.pattern.permute.xlu0 0
          %1238 = vperm.xlu0 %1237, %v1164
          %v1239 = vpop.permute.xlu0 %1238
          %1242 = vset.pattern.permute.xlu0 0
          %1243 = vperm.xlu0 %1242, %v1165
          %v1244 = vpop.permute.xlu0 %1243
          %1247 = vset.pattern.permute.xlu0 0
          %1248 = vperm.xlu0 %1247, %v1166
          %v1249 = vpop.permute.xlu0 %1248
          %v1251 = vsub.f32 %v1227, %v1234
          %v1252 = vsub.f32 %v1228, %v1239
          %v1253 = vsub.f32 %v1229, %v1244
          %v1254 = vsub.f32 %v1230, %v1249
          %1256 = vset.pattern.permute.xlu0 0
          %1257 = vperm.xlu0 %1256, %v1196
          %v1258 = vpop.permute.xlu0 %1257
          %1261 = vset.pattern.permute.xlu0 0
          %1262 = vperm.xlu0 %1261, %v1206
          %v1263 = vpop.permute.xlu0 %1262
          %1266 = vset.pattern.permute.xlu0 0
          %1267 = vperm.xlu0 %1266, %v1216
          %v1268 = vpop.permute.xlu0 %1267
          %1271 = vset.pattern.permute.xlu0 0
          %1272 = vperm.xlu0 %1271, %v1226
          %v1273 = vpop.permute.xlu0 %1272
          %v1275 = vmul.f32 %v1251, %v1258
          %v1276 = vmul.f32 %v1252, %v1263
          %v1277 = vmul.f32 %v1253, %v1268
          %v1278 = vmul.f32 %v1254, %v1273
          %v1279 = vld [vmem:[#allocation8] sm:$0xff]
          %v1280 = vld [vmem:[#allocation8 + $0x8] sm:$0xff]
          %v1281 = vld [vmem:[#allocation8 + $0x10] sm:$0xff]
          %v1282 = vld [vmem:[#allocation8 + $0x18] sm:$0xff]
          %v1283 = vld [vmem:[#allocation9] sm:$0xff]
          %v1284 = vld [vmem:[#allocation9 + $0x8] sm:$0xff]
          %v1285 = vld [vmem:[#allocation9 + $0x10] sm:$0xff]
          %v1286 = vld [vmem:[#allocation9 + $0x18] sm:$0xff]
          %1288 = vset.pattern.permute.xlu0 0
          %1289 = vperm.xlu0 %1288, %v1283
          %v1290 = vpop.permute.xlu0 %1289
          %1293 = vset.pattern.permute.xlu0 0
          %1294 = vperm.xlu0 %1293, %v1284
          %v1295 = vpop.permute.xlu0 %1294
          %1298 = vset.pattern.permute.xlu0 0
          %1299 = vperm.xlu0 %1298, %v1285
          %v1300 = vpop.permute.xlu0 %1299
          %1303 = vset.pattern.permute.xlu0 0
          %1304 = vperm.xlu0 %1303, %v1286
          %v1305 = vpop.permute.xlu0 %1304
          %vm1307 = vcmask 261120
          %v1309 = vsel %vm1307, %v1279, 0
          %v1312 = vsel %vm1307, %v1280, 0
          %v1315 = vsel %vm1307, %v1281, 0
          %v1318 = vsel %vm1307, %v1282, 0
          %1320 = vmatpush.msra.mxu0 0.0
          %1321 = vmatpush.msra.mxu0 0.0
          %1322 = vmatpush.msra.mxu0 0.0
          %1323 = vmatpush.msra.mxu0 0.0
          %1324 = vmatpush.msra.mxu0 0.0
          %1325 = vmatpush.msra.mxu0 0.0
          %1326 = vmatpush.msra.mxu0 0.0
          %1327 = vmatpush.msra.mxu0 0.0
          %1328 = vmatpush.msra.mxu0 0.0
          %1329 = vmatpush.msra.mxu0 0.0
          %1330 = vmatpush.msra.mxu0 0.0
          %1331 = vmatpush.msra.mxu0 0.0
          %1332 = vmatpush.msra.mxu0 %v1278
          %1333 = vmatpush.msra.mxu0 %v1277
          %1334 = vmatpush.msra.mxu0 %v1276
          %1335 = vmatpush.msra.mxu0 %v1275
          %1336 = vmatmul.f32.gmra.mxu0 %v1309
          %v1337 = vpop.f32.mrf.mxu0
          %v1338 = vadd.f32 %v1290, %v1337
          %1339 = vmatmul.f32.gmra.mxu0 %v1312
          %v1340 = vpop.f32.mrf.mxu0
          %v1341 = vadd.f32 %v1295, %v1340
          %1342 = vmatmul.f32.gmra.mxu0 %v1315
          %v1343 = vpop.f32.mrf.mxu0
          %v1344 = vadd.f32 %v1300, %v1343
          %1345 = vmatmul.f32.gmra.mxu0 %v1318
          %v1346 = vpop.f32.mrf.mxu0
          %v1347 = vadd.f32 %v1305, %v1346
          %1348 = vdwg.mxu0
          %v1349 = vadd.f32 %v1227, %v1338
          %v1350 = vadd.f32 %v1228, %v1341
          %v1351 = vadd.f32 %v1229, %v1344
          %v1352 = vadd.f32 %v1230, %v1347
          %1353 = vst [vmem:[%s512] sm:$0xff] %v1349
          %1354 = vst [vmem:[%s512 + $0x8] sm:$0xff] %v1350
          %1355 = vst [vmem:[%s512 + $0x10] sm:$0xff] %v1351
          %1356 = vst [vmem:[%s512 + $0x18] sm:$0xff] %v1352
        $region156: #{mccnet_forward.1} parent=127 // pred_fallthru
          _
        %s1357 = sand.u32 %s286, 1
        %s1358 = sand.u32 %s286, 1
        %s1359 = smul.addr %s1358, 32
        %s1360 = scalar_lea.vmem [#allocation12], %s1359
        // Predicated region
        $region157: #{mccnet_forward.1} parent=127 // pred_check
          %p1361 = pneg %p296
        $region158: #{mccnet_forward.1} parent=127 // pred_check_branch
          %1363 = sbr.rel (%p1361) target = $region160
        $region159: #{mccnet_forward.1} parent=127 // pred_region
          %p1364 = scmp.eq.s32.totalorder %s27, 2
          %s1365 = scalar_select %p1364, %s28, 0
          %s1366 = smul.addr %s26, 8
          %s1367 = sadd.s32 %s1365, %s1366
          %s1368 = smul.addr %s1367, 8
          %s1369 = scalar_lea.vmem %s10, %s1368
          // Predicated region
          $region161: #{mccnet_forward.1} parent=159 // pred_check
            _
          $region162: #{mccnet_forward.1} parent=159 // pred_check_branch
            %1371 = sbr.rel (0) target = $region164
          $region163: #{mccnet_forward.1} parent=159 // pred_region
            // Predicated region
            $region165: #{mccnet_forward.1} parent=163 // pred_check
              _
            $region166: #{mccnet_forward.1} parent=163 // pred_check_branch
              %1373 = sbr.rel (0) target = $region168
            $region167: #{mccnet_forward.1} parent=163 // pred_region
              // Predicated region
              $region180: #{mccnet_forward.1} parent=167 // pred_check
                _
              $region181: #{mccnet_forward.1} parent=167 // pred_check_branch
                %1395 = sbr.rel (0) target = $region183
              $region182: #{mccnet_forward.1} parent=167 // pred_region
                loop: start=0, step=1, limit=1
                $region184: #{mccnet_forward.1} parent=182 // loop_pre_header
                  _
                $region185: #{mccnet_forward.1} parent=182 // loop_header
                  %s1397 = sphi 0, %s1401
                  %p1398 = scmp.ge.s32.totalorder %s1397, 1
                  %s1402 = sphi %s1360, %s1360
                  %s1403 = sphi %s1369, %s1369
                $region186: #{mccnet_forward.1} parent=182 // loop_header_branch
                  %1400 = sbr.rel (%p1398) target = $region190
                $region187: #{mccnet_forward.1} parent=182 // loop_body
                  %v1404 = vld [vmem:[%s1402] sm:$0xff]
                  %1405 = vst [vmem:[%s1403] sm:$0xff] %v1404
                  %v1406 = vld [vmem:[%s1402 + $0x8] sm:$0xff]
                  %1407 = vst [vmem:[%s1403 + $0x10] sm:$0xff] %v1406
                  %v1408 = vld [vmem:[%s1402 + $0x10] sm:$0xff]
                  %1409 = vst [vmem:[%s1403 + $0x20] sm:$0xff] %v1408
                  %v1410 = vld [vmem:[%s1402 + $0x18] sm:$0xff]
                  %1411 = vst [vmem:[%s1403 + $0x30] sm:$0xff] %v1410
                $region188: #{mccnet_forward.1} parent=182 // loop_footer
                  %s1401 = sadd.s32 1, %s1397
                $region189: #{mccnet_forward.1} parent=182 // loop_footer_branch
                  %1396 = sbr.rel target = $region185
                $region190: #{mccnet_forward.1} parent=182 // loop_exit
                  _
              $region183: #{mccnet_forward.1} parent=167 // pred_fallthru
                _
              // Predicated region
              $region191: #{mccnet_forward.1} parent=167 // pred_check
                _
              $region192: #{mccnet_forward.1} parent=167 // pred_check_branch
                %1413 = sbr.rel target = $region194
              $region193: #{mccnet_forward.1} parent=167 // pred_region
                _
              $region194: #{mccnet_forward.1} parent=167 // pred_fallthru
                _
            $region168: #{mccnet_forward.1} parent=163 // pred_fallthru
              _
            // Predicated region
            $region169: #{mccnet_forward.1} parent=163 // pred_check
              _
            $region170: #{mccnet_forward.1} parent=163 // pred_check_branch
              %1375 = sbr.rel target = $region172
            $region171: #{mccnet_forward.1} parent=163 // pred_region
              %s1377 = ssub.s32 256, 1
              loop: start=0, step=1, limit=1
              $region173: #{mccnet_forward.1} parent=171 // loop_pre_header
                _
              $region174: #{mccnet_forward.1} parent=171 // loop_header
                %s1379 = sphi 0, %s1383
                %p1380 = scmp.ge.s32.totalorder %s1379, 1
                %s1384 = sphi %s1360, %s1360
                %s1385 = sphi %s1369, %s1369
              $region175: #{mccnet_forward.1} parent=171 // loop_header_branch
                %1382 = sbr.rel (%p1380) target = $region179
              $region176: #{mccnet_forward.1} parent=171 // loop_body
                %v1386 = vld [vmem:[%s1384] sm:%s1377]
                %1387 = vst [vmem:[%s1385] sm:%s1377] %v1386
                %v1388 = vld [vmem:[%s1384 + $0x8] sm:%s1377]
                %1389 = vst [vmem:[%s1385 + $0x10] sm:%s1377] %v1388
                %v1390 = vld [vmem:[%s1384 + $0x10] sm:%s1377]
                %1391 = vst [vmem:[%s1385 + $0x20] sm:%s1377] %v1390
                %v1392 = vld [vmem:[%s1384 + $0x18] sm:%s1377]
                %1393 = vst [vmem:[%s1385 + $0x30] sm:%s1377] %v1392
              $region177: #{mccnet_forward.1} parent=171 // loop_footer
                %s1383 = sadd.s32 1, %s1379
              $region178: #{mccnet_forward.1} parent=171 // loop_footer_branch
                %1378 = sbr.rel target = $region174
              $region179: #{mccnet_forward.1} parent=171 // loop_exit
                _
            $region172: #{mccnet_forward.1} parent=163 // pred_fallthru
              _
          $region164: #{mccnet_forward.1} parent=159 // pred_fallthru
            _
          %1414 = vnop
        $region160: #{mccnet_forward.1} parent=127 // pred_fallthru
          _
      $region128: #{mccnet_forward.1} parent=5 // pred_fallthru
        _
      %p1415 = scmp.le.s32.totalorder 2, %s16
      // Predicated region
      $region195: #{mccnet_forward.1} parent=5 // pred_check
        %p1416 = pneg %p1415
      $region196: #{mccnet_forward.1} parent=5 // pred_check_branch
        %1418 = sbr.rel (%p1416) target = $region198
      $region197: #{mccnet_forward.1} parent=5 // pred_region
        %s1419 = ssub.s32 %s16, 2
        // Predicated region
        $region199: #{mccnet_forward.1} parent=197 // pred_check
          %p1420 = pneg %p302
        $region200: #{mccnet_forward.1} parent=197 // pred_check_branch
          %1422 = sbr.rel (%p1420) target = $region202
        $region201: #{mccnet_forward.1} parent=197 // pred_region
          %s1423 = sand.u32 %s287, 1
          %s1424 = sand.u32 %s287, 1
          %s1425 = smul.addr %s1424, 32
          %s1426 = scalar_lea.vmem [#allocation12], %s1425
        $region202: #{mccnet_forward.1} parent=197 // pred_fallthru
          _
      $region198: #{mccnet_forward.1} parent=5 // pred_fallthru
        _
    $region6: #{mccnet_forward.1} parent=1 // loop_footer
      %s20 = sadd.s32 1, %s16
    $region7: #{mccnet_forward.1} parent=1 // loop_footer_branch
      %15 = sbr.rel target = $region3
    $region8: #{mccnet_forward.1} parent=1 // loop_exit
      _

</llo_original>
